<compile_context>
chip_gen: v5e
topology: v5e:2x2
jax: 0.10.0
libtpu: 0.0.40
codegen_flags: <defaults>
</compile_context>

<pallas_src>
from functools import partial

import jax
import jax.numpy as jnp
from jax.experimental import pallas as pl
from jax.experimental.pallas import tpu as pltpu


# ---------------------------------------------------------------------------
# Pallas kernel
# ---------------------------------------------------------------------------
def simple_gru_kernel(idx_ref,                       # SMEM (B,) int32 (scalar prefetch)
                      wih0_hbm,                      # HBM  (C, 3H)  f32 (pl.ANY, manual DMA)
                      h_ref,                         # VMEM (2, B, H) f32
                      whh0_ref, b0_ref,              # (H, 3H) wdtype, (4, H) f32
                      wih1_ref, whh1_ref, b1_ref,    # (H, 3H), (H, 3H) wdtype, (4, H) f32
                      wh2o_ref, bh2o_ref,            # (H, Ct) wdtype, (1, Ct) f32
                      logit_ref, hnew_ref,           # (B, Ct) f32, (2, B, H) f32
                      gi0_scr,                       # VMEM (B, 3H) f32 (gathered rows)
                      h1_scr,                        # VMEM (B, H)  f32 (carried across c tiles)
                      row_sem):                      # DMA semaphores (B,)
    c = pl.program_id(0)
    B, H = h1_scr.shape
    wdtype = whh0_ref.dtype

    @pl.when(c == 0)
    def _gru_cell():
        # Per-row gather DMA descriptor: row idx[b] of W_ih_l0^T -> gi0_scr[b].
        def row_copy(b):
            return pltpu.make_async_copy(
                wih0_hbm.at[pl.ds(idx_ref[b], 1)],   # (1, 3H) from HBM
                gi0_scr.at[pl.ds(b, 1)],             # (1, 3H) in VMEM
                row_sem.at[b])

        # 1) Kick off all B row gathers (B * 3H * 4 bytes total).
        for b in range(B):
            row_copy(b).start()

        # 2) Overlap: the hidden-side layer-0 matmul does not need the gather.
        h0 = h_ref[0]                                            # (B, H)
        h1 = h_ref[1]
        gh0 = jnp.dot(h0.astype(wdtype), whh0_ref[...],
                      preferred_element_type=jnp.float32)        # (B, 3H)

        # 3) Wait for the gathered input rows, finish layer 0 (gate order r,z,n).
        for b in range(B):
            row_copy(b).wait()
        gi0 = gi0_scr[...]                                       # (B, 3H) f32
        b0 = b0_ref[...]                                         # [b_r, b_z, b_in, b_hn]
        r0 = jax.nn.sigmoid(gi0[:, 0:H] + gh0[:, 0:H] + b0[0])
        z0 = jax.nn.sigmoid(gi0[:, H:2 * H] + gh0[:, H:2 * H] + b0[1])
        n0 = jnp.tanh(gi0[:, 2 * H:3 * H] + b0[2]
                      + r0 * (gh0[:, 2 * H:3 * H] + b0[3]))
        h0_new = (1.0 - z0) * n0 + z0 * h0

        # ---- layer 1 ----
        b1 = b1_ref[...]
        h0n = h0_new.astype(wdtype)
        gi1 = jnp.dot(h0n, wih1_ref[...], preferred_element_type=jnp.float32)
        gh1 = jnp.dot(h1.astype(wdtype), whh1_ref[...],
                      preferred_element_type=jnp.float32)
        r1 = jax.nn.sigmoid(gi1[:, 0:H] + gh1[:, 0:H] + b1[0])
        z1 = jax.nn.sigmoid(gi1[:, H:2 * H] + gh1[:, H:2 * H] + b1[1])
        n1 = jnp.tanh(gi1[:, 2 * H:3 * H] + b1[2]
                      + r1 * (gh1[:, 2 * H:3 * H] + b1[3]))
        h1_new = (1.0 - z1) * n1 + z1 * h1

        hnew_ref[0] = h0_new
        hnew_ref[1] = h1_new
        h1_scr[...] = h1_new                 # carried for the remaining head tiles

    # ---- h2o head, one lane-dense Ct-wide tile per grid step ----
    logit_ref[...] = jnp.tanh(
        jnp.dot(h1_scr[...].astype(wdtype), wh2o_ref[...],
                preferred_element_type=jnp.float32)
        + bh2o_ref[...])


# ---------------------------------------------------------------------------
# One-time parameter preparation (layout / fold / pad, hoisted out of the step)
# ---------------------------------------------------------------------------
def prepare_params(params, hidden_size, weight_dtype=jnp.bfloat16, lane=128):
    """Transpose / fold / pad PyTorch-layout GRU params once, for kernel use."""
    H = hidden_size
    C = params["w_h2o"].shape[0]
    Cpad = ((C + lane - 1) // lane) * lane

    def gate_bias(b_ih, b_hh):
        # fold b_ih + b_hh for r and z; keep the n-gate biases separate because
        # the hidden-side n bias is multiplied by r inside the cell.
        return jnp.stack([
            b_ih[0:H] + b_hh[0:H],          # b_r
            b_ih[H:2 * H] + b_hh[H:2 * H],  # b_z
            b_ih[2 * H:3 * H],              # b_in
            b_hh[2 * H:3 * H],              # b_hn
        ], axis=0).astype(jnp.float32)      # (4, H)

    prep = {
        # (C, 3H) f32: row c = gate contributions of item c (in-kernel row gather)
        "w_ih_l0_g": params["w_ih_l0"].T.astype(jnp.float32),
        "w_hh_l0": params["w_hh_l0"].T.astype(weight_dtype),       # (H, 3H)
        "bias_l0": gate_bias(params["b_ih_l0"], params["b_hh_l0"]),
        "w_ih_l1": params["w_ih_l1"].T.astype(weight_dtype),       # (H, 3H)
        "w_hh_l1": params["w_hh_l1"].T.astype(weight_dtype),       # (H, 3H)
        "bias_l1": gate_bias(params["b_ih_l1"], params["b_hh_l1"]),
        # lane-pad the item dimension of the output head to a multiple of 128
        "w_h2o": jnp.pad(params["w_h2o"].T, ((0, 0), (0, Cpad - C))).astype(weight_dtype),
        "b_h2o": jnp.pad(params["b_h2o"], (0, Cpad - C)).astype(jnp.float32).reshape(1, Cpad),
    }
    return prep


# ---------------------------------------------------------------------------
# Forward wrapper (single timestep, matching SimpleGRU.forward eval path)
# ---------------------------------------------------------------------------
@partial(jax.jit, static_argnums=(3, 4))
def simple_gru_forward(batch_input, hidden_state, prep, output_size, c_tile=2048):
    L, B, H = hidden_state.shape
    assert L == 2, "this kernel is specialized to num_layers=2"
    C_table = prep["w_ih_l0_g"].shape[0]
    Cpad = prep["w_h2o"].shape[1]
    Ct = min(c_tile, Cpad)
    assert Cpad % Ct == 0 and Ct % 128 == 0
    num_c = Cpad // Ct

    # Clamp indices so the data-dependent row DMA can never read out of bounds.
    idx = jnp.clip(batch_input.astype(jnp.int32), 0, C_table - 1)

    grid_spec = pltpu.PrefetchScalarGridSpec(
        num_scalar_prefetch=1,
        grid=(num_c,),
        in_specs=[
            # W_ih_l0^T stays in HBM; gathered row-by-row with manual DMA.
            pl.BlockSpec(memory_space=pl.ANY),
            # Constant index_maps -> DMA'd once, resident across all head tiles.
            pl.BlockSpec((L, B, H), lambda c, ids: (0, 0, 0)),   # hidden state
            pl.BlockSpec((H, 3 * H), lambda c, ids: (0, 0)),     # w_hh_l0
            pl.BlockSpec((4, H), lambda c, ids: (0, 0)),         # bias_l0
            pl.BlockSpec((H, 3 * H), lambda c, ids: (0, 0)),     # w_ih_l1
            pl.BlockSpec((H, 3 * H), lambda c, ids: (0, 0)),     # w_hh_l1
            pl.BlockSpec((4, H), lambda c, ids: (0, 0)),         # bias_l1
            # h2o head streamed tile-by-tile over the padded item dimension.
            pl.BlockSpec((H, Ct), lambda c, ids: (0, c)),        # w_h2o tile
            pl.BlockSpec((1, Ct), lambda c, ids: (0, c)),        # b_h2o tile
        ],
        out_specs=[
            pl.BlockSpec((B, Ct), lambda c, ids: (0, c)),        # logit (lane-dense)
            pl.BlockSpec((L, B, H), lambda c, ids: (0, 0, 0)),   # new hidden state
        ],
        scratch_shapes=[
            pltpu.VMEM((B, 3 * H), jnp.float32),                 # gathered gi0 rows
            pltpu.VMEM((B, H), jnp.float32),                     # h1_new carry
            pltpu.SemaphoreType.DMA((B,)),                       # per-row gather sems
        ],
    )

    logit_pad, hidden_new = pl.pallas_call(
        simple_gru_kernel,
        out_shape=(jax.ShapeDtypeStruct((B, Cpad), jnp.float32),
                   jax.ShapeDtypeStruct((L, B, H), jnp.float32)),
        grid_spec=grid_spec,
        # 'arbitrary': head tiles depend on VMEM scratch written at tile 0.
        compiler_params=pltpu.CompilerParams(dimension_semantics=("arbitrary",)),
    )(idx,
      prep["w_ih_l0_g"],
      hidden_state.astype(jnp.float32),
      prep["w_hh_l0"], prep["bias_l0"],
      prep["w_ih_l1"], prep["w_hh_l1"], prep["bias_l1"],
      prep["w_h2o"], prep["b_h2o"])

    logit = logit_pad[:, :output_size]
    output = hidden_new[L - 1]
    return logit, hidden_new, output


# ---------------------------------------------------------------------------
# Deterministic parameter init (shapes follow torch.nn.GRU / nn.Linear)
# ---------------------------------------------------------------------------
def init_params(key, input_size, hidden_size, output_size):
    H, C = hidden_size, output_size
    k = 1.0 / jnp.sqrt(jnp.float32(H))
    names_shapes = [
        ("w_ih_l0", (3 * H, input_size)), ("w_hh_l0", (3 * H, H)),
        ("b_ih_l0", (3 * H,)), ("b_hh_l0", (3 * H,)),
        ("w_ih_l1", (3 * H, H)), ("w_hh_l1", (3 * H, H)),
        ("b_ih_l1", (3 * H,)), ("b_hh_l1", (3 * H,)),
        ("w_h2o", (C, H)), ("b_h2o", (C,)),
    ]
    params = {}
    keys = jax.random.split(key, len(names_shapes))
    for sub, (name, shape) in zip(keys, names_shapes):
        params[name] = jax.random.uniform(sub, shape, jnp.float32, -k, k)
    return params


# ---------------------------------------------------------------------------
# Pure-JAX reference (PyTorch semantics) for correctness check
# ---------------------------------------------------------------------------
def reference_forward(batch_input, hidden_state, params):
    C = params["w_h2o"].shape[0]

    def cell(x, h, w_ih, w_hh, b_ih, b_hh):
        gi = x @ w_ih.T + b_ih
        gh = h @ w_hh.T + b_hh
        i_r, i_z, i_n = jnp.split(gi, 3, axis=1)
        h_r, h_z, h_n = jnp.split(gh, 3, axis=1)
        r = jax.nn.sigmoid(i_r + h_r)
        z = jax.nn.sigmoid(i_z + h_z)
        n = jnp.tanh(i_n + r * h_n)
        return (1.0 - z) * n + z * h

    x = jax.nn.one_hot(batch_input, C, dtype=jnp.float32)
    h0 = cell(x, hidden_state[0], params["w_ih_l0"], params["w_hh_l0"],
              params["b_ih_l0"], params["b_hh_l0"])
    h1 = cell(h0, hidden_state[1], params["w_ih_l1"], params["w_hh_l1"],
              params["b_ih_l1"], params["b_hh_l1"])
    logit = jnp.tanh(h1 @ params["w_h2o"].T + params["b_h2o"])
    return logit, jnp.stack([h0, h1]), h1


# ---------------------------------------------------------------------------
if __name__ == "__main__":
    B = 8            # batch_size
    C = 512          # input_size == output_size (num items)
    H = 128          # hidden_size
    L = 2            # num_layers
    CT = 256         # head tile width (2 head tiles -> exercises the C tiling)

    key = jax.random.PRNGKey(0)
    k_param, k_idx, k_hid = jax.random.split(key, 3)

    params = init_params(k_param, input_size=C, hidden_size=H, output_size=C)
    batch_input = jax.random.randint(k_idx, (B,), 0, C, dtype=jnp.int32)
    hidden_state = jax.random.normal(k_hid, (L, B, H), dtype=jnp.float32)

    logit_ref, hidden_ref, output_ref = reference_forward(
        batch_input, hidden_state, params)

    # --- f32 weights: exact-math check against the PyTorch-semantics reference ---
    prep32 = prepare_params(params, hidden_size=H, weight_dtype=jnp.float32)
    logit, hidden_new, output = jax.block_until_ready(
        simple_gru_forward(batch_input, hidden_state, prep32, C, CT))
    assert logit.shape == (B, C) and hidden_new.shape == (L, B, H) and output.shape == (B, H)
    assert jnp.allclose(logit, logit_ref, atol=2e-5, rtol=2e-5)
    assert jnp.allclose(hidden_new, hidden_ref, atol=2e-5, rtol=2e-5)
    assert jnp.allclose(output, output_ref, atol=2e-5, rtol=2e-5)

    # --- bf16 weights (perf config): looser tolerance per bf16 weight rounding ---
    prep16 = prepare_params(params, hidden_size=H, weight_dtype=jnp.bfloat16)
    logit16, hidden16, output16 = jax.block_until_ready(
        simple_gru_forward(batch_input, hidden_state, prep16, C, CT))
    assert jnp.allclose(logit16, logit_ref, atol=5e-2, rtol=0)
    assert jnp.allclose(hidden16, hidden_ref, atol=5e-2, rtol=0)
    assert jnp.allclose(output16, output_ref, atol=5e-2, rtol=0)

    print("KERNEL_OK")
</pallas_src>

<mosaic_0001>
module attributes {stable_mosaic.version = 11 : i64} {
  func.func @simple_gru_kernel(%arg0: i32, %arg1: memref<8xi32, #tpu.memory_space<smem>>, %arg2: memref<512x384xf32, #tpu.memory_space<any>>, %arg3: memref<2x8x128xf32, #tpu.memory_space<vmem>>, %arg4: memref<128x384xf32, #tpu.memory_space<vmem>>, %arg5: memref<4x128xf32, #tpu.memory_space<vmem>>, %arg6: memref<128x384xf32, #tpu.memory_space<vmem>>, %arg7: memref<128x384xf32, #tpu.memory_space<vmem>>, %arg8: memref<4x128xf32, #tpu.memory_space<vmem>>, %arg9: memref<128x256xf32, #tpu.memory_space<vmem>>, %arg10: memref<1x256xf32, #tpu.memory_space<vmem>>, %arg11: memref<8x256xf32, #tpu.memory_space<vmem>>, %arg12: memref<2x8x128xf32, #tpu.memory_space<vmem>>, %arg13: memref<8x384xf32, #tpu.memory_space<vmem>>, %arg14: memref<8x128xf32, #tpu.memory_space<vmem>>, %arg15: memref<8x!tpu.dma_semaphore, #tpu.memory_space<semaphore_mem>>) attributes {dimension_semantics = [#tpu.dimension_semantics<arbitrary>], iteration_bounds = array<i64: 2>, scalar_prefetch = 1 : i64, scratch_operands = 3 : i64, tpu.core_type = #tpu.core_type<tc>, window_params = [{}, {pipeline_mode = #tpu.pipeline_mode<synchronous>, transform_indices = @transform_1, window_bounds = array<i64: 2, 8, 128>}, {pipeline_mode = #tpu.pipeline_mode<synchronous>, transform_indices = @transform_2, window_bounds = array<i64: 128, 384>}, {pipeline_mode = #tpu.pipeline_mode<synchronous>, transform_indices = @transform_3, window_bounds = array<i64: 4, 128>}, {pipeline_mode = #tpu.pipeline_mode<synchronous>, transform_indices = @transform_4, window_bounds = array<i64: 128, 384>}, {pipeline_mode = #tpu.pipeline_mode<synchronous>, transform_indices = @transform_5, window_bounds = array<i64: 128, 384>}, {pipeline_mode = #tpu.pipeline_mode<synchronous>, transform_indices = @transform_6, window_bounds = array<i64: 4, 128>}, {transform_indices = @transform_7, window_bounds = array<i64: 128, 256>}, {transform_indices = @transform_8, window_bounds = array<i64: 1, 256>}, {transform_indices = @transform_9, window_bounds = array<i64: 8, 256>}, {pipeline_mode = #tpu.pipeline_mode<synchronous>, transform_indices = @transform_10, window_bounds = array<i64: 2, 8, 128>}]} {
    %c0_i32 = arith.constant 0 : i32
    %0 = arith.cmpi eq, %arg0, %c0_i32 : i32
    %1 = arith.extui %0 : i1 to i32
    %c0_i32_0 = arith.constant 0 : i32
    %2 = arith.cmpi ne, %1, %c0_i32_0 : i32
    scf.if %2 {
      %c0_8 = arith.constant 0 : index
      %11 = memref.load %arg1[%c0_8] : memref<8xi32, #tpu.memory_space<smem>>
      %c0_i32_9 = arith.constant 0 : i32
      %c0_i32_10 = arith.constant 0 : i32
      %12 = tpu.memref_slice %arg2[%11, %c0_i32_10] : memref<512x384xf32, #tpu.memory_space<any>> -> memref<1x384xf32, #tpu.memory_space<any>>
      %c0_i32_11 = arith.constant 0 : i32
      %c0_i32_12 = arith.constant 0 : i32
      %13 = tpu.memref_slice %arg13[%c0_i32_11, %c0_i32_12] : memref<8x384xf32, #tpu.memory_space<vmem>> -> memref<1x384xf32, #tpu.memory_space<vmem>>
      %14 = tpu.memref_slice %arg15[%c0_i32_9] : memref<8x!tpu.dma_semaphore, #tpu.memory_space<semaphore_mem>> -> memref<1x!tpu.dma_semaphore, #tpu.memory_space<semaphore_mem>>
      %15 = tpu.memref_squeeze %14 : memref<1x!tpu.dma_semaphore, #tpu.memory_space<semaphore_mem>> -> memref<!tpu.dma_semaphore, #tpu.memory_space<semaphore_mem>>
      tpu.enqueue_dma source(%12 : memref<1x384xf32, #tpu.memory_space<any>>) target(%13 : memref<1x384xf32, #tpu.memory_space<vmem>>) target_semaphore(%15 : memref<!tpu.dma_semaphore, #tpu.memory_space<semaphore_mem>>)
      %c1 = arith.constant 1 : index
      %16 = memref.load %arg1[%c1] : memref<8xi32, #tpu.memory_space<smem>>
      %c1_i32 = arith.constant 1 : i32
      %c0_i32_13 = arith.constant 0 : i32
      %17 = tpu.memref_slice %arg2[%16, %c0_i32_13] : memref<512x384xf32, #tpu.memory_space<any>> -> memref<1x384xf32, #tpu.memory_space<any>>
      %c1_i32_14 = arith.constant 1 : i32
      %c0_i32_15 = arith.constant 0 : i32
      %18 = tpu.memref_slice %arg13[%c1_i32_14, %c0_i32_15] : memref<8x384xf32, #tpu.memory_space<vmem>> -> memref<1x384xf32, #tpu.memory_space<vmem>>
      %19 = tpu.memref_slice %arg15[%c1_i32] : memref<8x!tpu.dma_semaphore, #tpu.memory_space<semaphore_mem>> -> memref<1x!tpu.dma_semaphore, #tpu.memory_space<semaphore_mem>>
      %20 = tpu.memref_squeeze %19 : memref<1x!tpu.dma_semaphore, #tpu.memory_space<semaphore_mem>> -> memref<!tpu.dma_semaphore, #tpu.memory_space<semaphore_mem>>
      tpu.enqueue_dma source(%17 : memref<1x384xf32, #tpu.memory_space<any>>) target(%18 : memref<1x384xf32, #tpu.memory_space<vmem>>) target_semaphore(%20 : memref<!tpu.dma_semaphore, #tpu.memory_space<semaphore_mem>>)
      %c2 = arith.constant 2 : index
      %21 = memref.load %arg1[%c2] : memref<8xi32, #tpu.memory_space<smem>>
      %c2_i32 = arith.constant 2 : i32
      %c0_i32_16 = arith.constant 0 : i32
      %22 = tpu.memref_slice %arg2[%21, %c0_i32_16] : memref<512x384xf32, #tpu.memory_space<any>> -> memref<1x384xf32, #tpu.memory_space<any>>
      %c2_i32_17 = arith.constant 2 : i32
      %c0_i32_18 = arith.constant 0 : i32
      %23 = tpu.memref_slice %arg13[%c2_i32_17, %c0_i32_18] : memref<8x384xf32, #tpu.memory_space<vmem>> -> memref<1x384xf32, #tpu.memory_space<vmem>>
      %24 = tpu.memref_slice %arg15[%c2_i32] : memref<8x!tpu.dma_semaphore, #tpu.memory_space<semaphore_mem>> -> memref<1x!tpu.dma_semaphore, #tpu.memory_space<semaphore_mem>>
      %25 = tpu.memref_squeeze %24 : memref<1x!tpu.dma_semaphore, #tpu.memory_space<semaphore_mem>> -> memref<!tpu.dma_semaphore, #tpu.memory_space<semaphore_mem>>
      tpu.enqueue_dma source(%22 : memref<1x384xf32, #tpu.memory_space<any>>) target(%23 : memref<1x384xf32, #tpu.memory_space<vmem>>) target_semaphore(%25 : memref<!tpu.dma_semaphore, #tpu.memory_space<semaphore_mem>>)
      %c3 = arith.constant 3 : index
      %26 = memref.load %arg1[%c3] : memref<8xi32, #tpu.memory_space<smem>>
      %c3_i32 = arith.constant 3 : i32
      %c0_i32_19 = arith.constant 0 : i32
      %27 = tpu.memref_slice %arg2[%26, %c0_i32_19] : memref<512x384xf32, #tpu.memory_space<any>> -> memref<1x384xf32, #tpu.memory_space<any>>
      %c3_i32_20 = arith.constant 3 : i32
      %c0_i32_21 = arith.constant 0 : i32
      %28 = tpu.memref_slice %arg13[%c3_i32_20, %c0_i32_21] : memref<8x384xf32, #tpu.memory_space<vmem>> -> memref<1x384xf32, #tpu.memory_space<vmem>>
      %29 = tpu.memref_slice %arg15[%c3_i32] : memref<8x!tpu.dma_semaphore, #tpu.memory_space<semaphore_mem>> -> memref<1x!tpu.dma_semaphore, #tpu.memory_space<semaphore_mem>>
      %30 = tpu.memref_squeeze %29 : memref<1x!tpu.dma_semaphore, #tpu.memory_space<semaphore_mem>> -> memref<!tpu.dma_semaphore, #tpu.memory_space<semaphore_mem>>
      tpu.enqueue_dma source(%27 : memref<1x384xf32, #tpu.memory_space<any>>) target(%28 : memref<1x384xf32, #tpu.memory_space<vmem>>) target_semaphore(%30 : memref<!tpu.dma_semaphore, #tpu.memory_space<semaphore_mem>>)
      %c4 = arith.constant 4 : index
      %31 = memref.load %arg1[%c4] : memref<8xi32, #tpu.memory_space<smem>>
      %c4_i32 = arith.constant 4 : i32
      %c0_i32_22 = arith.constant 0 : i32
      %32 = tpu.memref_slice %arg2[%31, %c0_i32_22] : memref<512x384xf32, #tpu.memory_space<any>> -> memref<1x384xf32, #tpu.memory_space<any>>
      %c4_i32_23 = arith.constant 4 : i32
      %c0_i32_24 = arith.constant 0 : i32
      %33 = tpu.memref_slice %arg13[%c4_i32_23, %c0_i32_24] : memref<8x384xf32, #tpu.memory_space<vmem>> -> memref<1x384xf32, #tpu.memory_space<vmem>>
      %34 = tpu.memref_slice %arg15[%c4_i32] : memref<8x!tpu.dma_semaphore, #tpu.memory_space<semaphore_mem>> -> memref<1x!tpu.dma_semaphore, #tpu.memory_space<semaphore_mem>>
      %35 = tpu.memref_squeeze %34 : memref<1x!tpu.dma_semaphore, #tpu.memory_space<semaphore_mem>> -> memref<!tpu.dma_semaphore, #tpu.memory_space<semaphore_mem>>
      tpu.enqueue_dma source(%32 : memref<1x384xf32, #tpu.memory_space<any>>) target(%33 : memref<1x384xf32, #tpu.memory_space<vmem>>) target_semaphore(%35 : memref<!tpu.dma_semaphore, #tpu.memory_space<semaphore_mem>>)
      %c5 = arith.constant 5 : index
      %36 = memref.load %arg1[%c5] : memref<8xi32, #tpu.memory_space<smem>>
      %c5_i32 = arith.constant 5 : i32
      %c0_i32_25 = arith.constant 0 : i32
      %37 = tpu.memref_slice %arg2[%36, %c0_i32_25] : memref<512x384xf32, #tpu.memory_space<any>> -> memref<1x384xf32, #tpu.memory_space<any>>
      %c5_i32_26 = arith.constant 5 : i32
      %c0_i32_27 = arith.constant 0 : i32
      %38 = tpu.memref_slice %arg13[%c5_i32_26, %c0_i32_27] : memref<8x384xf32, #tpu.memory_space<vmem>> -> memref<1x384xf32, #tpu.memory_space<vmem>>
      %39 = tpu.memref_slice %arg15[%c5_i32] : memref<8x!tpu.dma_semaphore, #tpu.memory_space<semaphore_mem>> -> memref<1x!tpu.dma_semaphore, #tpu.memory_space<semaphore_mem>>
      %40 = tpu.memref_squeeze %39 : memref<1x!tpu.dma_semaphore, #tpu.memory_space<semaphore_mem>> -> memref<!tpu.dma_semaphore, #tpu.memory_space<semaphore_mem>>
      tpu.enqueue_dma source(%37 : memref<1x384xf32, #tpu.memory_space<any>>) target(%38 : memref<1x384xf32, #tpu.memory_space<vmem>>) target_semaphore(%40 : memref<!tpu.dma_semaphore, #tpu.memory_space<semaphore_mem>>)
      %c6 = arith.constant 6 : index
      %41 = memref.load %arg1[%c6] : memref<8xi32, #tpu.memory_space<smem>>
      %c6_i32 = arith.constant 6 : i32
      %c0_i32_28 = arith.constant 0 : i32
      %42 = tpu.memref_slice %arg2[%41, %c0_i32_28] : memref<512x384xf32, #tpu.memory_space<any>> -> memref<1x384xf32, #tpu.memory_space<any>>
      %c6_i32_29 = arith.constant 6 : i32
      %c0_i32_30 = arith.constant 0 : i32
      %43 = tpu.memref_slice %arg13[%c6_i32_29, %c0_i32_30] : memref<8x384xf32, #tpu.memory_space<vmem>> -> memref<1x384xf32, #tpu.memory_space<vmem>>
      %44 = tpu.memref_slice %arg15[%c6_i32] : memref<8x!tpu.dma_semaphore, #tpu.memory_space<semaphore_mem>> -> memref<1x!tpu.dma_semaphore, #tpu.memory_space<semaphore_mem>>
      %45 = tpu.memref_squeeze %44 : memref<1x!tpu.dma_semaphore, #tpu.memory_space<semaphore_mem>> -> memref<!tpu.dma_semaphore, #tpu.memory_space<semaphore_mem>>
      tpu.enqueue_dma source(%42 : memref<1x384xf32, #tpu.memory_space<any>>) target(%43 : memref<1x384xf32, #tpu.memory_space<vmem>>) target_semaphore(%45 : memref<!tpu.dma_semaphore, #tpu.memory_space<semaphore_mem>>)
      %c7 = arith.constant 7 : index
      %46 = memref.load %arg1[%c7] : memref<8xi32, #tpu.memory_space<smem>>
      %c7_i32 = arith.constant 7 : i32
      %c0_i32_31 = arith.constant 0 : i32
      %47 = tpu.memref_slice %arg2[%46, %c0_i32_31] : memref<512x384xf32, #tpu.memory_space<any>> -> memref<1x384xf32, #tpu.memory_space<any>>
      %c7_i32_32 = arith.constant 7 : i32
      %c0_i32_33 = arith.constant 0 : i32
      %48 = tpu.memref_slice %arg13[%c7_i32_32, %c0_i32_33] : memref<8x384xf32, #tpu.memory_space<vmem>> -> memref<1x384xf32, #tpu.memory_space<vmem>>
      %49 = tpu.memref_slice %arg15[%c7_i32] : memref<8x!tpu.dma_semaphore, #tpu.memory_space<semaphore_mem>> -> memref<1x!tpu.dma_semaphore, #tpu.memory_space<semaphore_mem>>
      %50 = tpu.memref_squeeze %49 : memref<1x!tpu.dma_semaphore, #tpu.memory_space<semaphore_mem>> -> memref<!tpu.dma_semaphore, #tpu.memory_space<semaphore_mem>>
      tpu.enqueue_dma source(%47 : memref<1x384xf32, #tpu.memory_space<any>>) target(%48 : memref<1x384xf32, #tpu.memory_space<vmem>>) target_semaphore(%50 : memref<!tpu.dma_semaphore, #tpu.memory_space<semaphore_mem>>)
      %c0_34 = arith.constant 0 : index
      %c0_35 = arith.constant 0 : index
      %c0_36 = arith.constant 0 : index
      %51 = vector.load %arg3[%c0_34, %c0_35, %c0_36] : memref<2x8x128xf32, #tpu.memory_space<vmem>>, vector<1x8x128xf32>
      %52 = vector.shape_cast %51 : vector<1x8x128xf32> to vector<8x128xf32>
      %c1_37 = arith.constant 1 : index
      %c0_38 = arith.constant 0 : index
      %c0_39 = arith.constant 0 : index
      %53 = vector.load %arg3[%c1_37, %c0_38, %c0_39] : memref<2x8x128xf32, #tpu.memory_space<vmem>>, vector<1x8x128xf32>
      %54 = vector.shape_cast %53 : vector<1x8x128xf32> to vector<8x128xf32>
      %c0_40 = arith.constant 0 : index
      %c0_41 = arith.constant 0 : index
      %55 = vector.load %arg4[%c0_40, %c0_41] : memref<128x384xf32, #tpu.memory_space<vmem>>, vector<128x384xf32>
      %cst_42 = arith.constant dense<0.000000e+00> : vector<8x384xf32>
      %56 = tpu.matmul %52, %55, %cst_42 {dimension_numbers = #tpu.dot_dimension_numbers<[1], [0], [0], [1], [0, 0, 1, 1], [], []>} : vector<8x128xf32>, vector<128x384xf32>, vector<8x384xf32> -> vector<8x384xf32>
      %c0_43 = arith.constant 0 : index
      %57 = memref.load %arg1[%c0_43] : memref<8xi32, #tpu.memory_space<smem>>
      %c0_i32_44 = arith.constant 0 : i32
      %c0_i32_45 = arith.constant 0 : i32
      %58 = tpu.memref_slice %arg2[%57, %c0_i32_45] : memref<512x384xf32, #tpu.memory_space<any>> -> memref<1x384xf32, #tpu.memory_space<any>>
      %c0_i32_46 = arith.constant 0 : i32
      %c0_i32_47 = arith.constant 0 : i32
      %59 = tpu.memref_slice %arg13[%c0_i32_46, %c0_i32_47] : memref<8x384xf32, #tpu.memory_space<vmem>> -> memref<1x384xf32, #tpu.memory_space<vmem>>
      %60 = tpu.memref_slice %arg15[%c0_i32_44] : memref<8x!tpu.dma_semaphore, #tpu.memory_space<semaphore_mem>> -> memref<1x!tpu.dma_semaphore, #tpu.memory_space<semaphore_mem>>
      %61 = tpu.memref_squeeze %60 : memref<1x!tpu.dma_semaphore, #tpu.memory_space<semaphore_mem>> -> memref<!tpu.dma_semaphore, #tpu.memory_space<semaphore_mem>>
      tpu.wait_dma2 semaphore(%61 : memref<!tpu.dma_semaphore, #tpu.memory_space<semaphore_mem>>) src(%58 : memref<1x384xf32, #tpu.memory_space<any>>) dst(%59 : memref<1x384xf32, #tpu.memory_space<vmem>>)
      %c1_48 = arith.constant 1 : index
      %62 = memref.load %arg1[%c1_48] : memref<8xi32, #tpu.memory_space<smem>>
      %c1_i32_49 = arith.constant 1 : i32
      %c0_i32_50 = arith.constant 0 : i32
      %63 = tpu.memref_slice %arg2[%62, %c0_i32_50] : memref<512x384xf32, #tpu.memory_space<any>> -> memref<1x384xf32, #tpu.memory_space<any>>
      %c1_i32_51 = arith.constant 1 : i32
      %c0_i32_52 = arith.constant 0 : i32
      %64 = tpu.memref_slice %arg13[%c1_i32_51, %c0_i32_52] : memref<8x384xf32, #tpu.memory_space<vmem>> -> memref<1x384xf32, #tpu.memory_space<vmem>>
      %65 = tpu.memref_slice %arg15[%c1_i32_49] : memref<8x!tpu.dma_semaphore, #tpu.memory_space<semaphore_mem>> -> memref<1x!tpu.dma_semaphore, #tpu.memory_space<semaphore_mem>>
      %66 = tpu.memref_squeeze %65 : memref<1x!tpu.dma_semaphore, #tpu.memory_space<semaphore_mem>> -> memref<!tpu.dma_semaphore, #tpu.memory_space<semaphore_mem>>
      tpu.wait_dma2 semaphore(%66 : memref<!tpu.dma_semaphore, #tpu.memory_space<semaphore_mem>>) src(%63 : memref<1x384xf32, #tpu.memory_space<any>>) dst(%64 : memref<1x384xf32, #tpu.memory_space<vmem>>)
      %c2_53 = arith.constant 2 : index
      %67 = memref.load %arg1[%c2_53] : memref<8xi32, #tpu.memory_space<smem>>
      %c2_i32_54 = arith.constant 2 : i32
      %c0_i32_55 = arith.constant 0 : i32
      %68 = tpu.memref_slice %arg2[%67, %c0_i32_55] : memref<512x384xf32, #tpu.memory_space<any>> -> memref<1x384xf32, #tpu.memory_space<any>>
      %c2_i32_56 = arith.constant 2 : i32
      %c0_i32_57 = arith.constant 0 : i32
      %69 = tpu.memref_slice %arg13[%c2_i32_56, %c0_i32_57] : memref<8x384xf32, #tpu.memory_space<vmem>> -> memref<1x384xf32, #tpu.memory_space<vmem>>
      %70 = tpu.memref_slice %arg15[%c2_i32_54] : memref<8x!tpu.dma_semaphore, #tpu.memory_space<semaphore_mem>> -> memref<1x!tpu.dma_semaphore, #tpu.memory_space<semaphore_mem>>
      %71 = tpu.memref_squeeze %70 : memref<1x!tpu.dma_semaphore, #tpu.memory_space<semaphore_mem>> -> memref<!tpu.dma_semaphore, #tpu.memory_space<semaphore_mem>>
      tpu.wait_dma2 semaphore(%71 : memref<!tpu.dma_semaphore, #tpu.memory_space<semaphore_mem>>) src(%68 : memref<1x384xf32, #tpu.memory_space<any>>) dst(%69 : memref<1x384xf32, #tpu.memory_space<vmem>>)
      %c3_58 = arith.constant 3 : index
      %72 = memref.load %arg1[%c3_58] : memref<8xi32, #tpu.memory_space<smem>>
      %c3_i32_59 = arith.constant 3 : i32
      %c0_i32_60 = arith.constant 0 : i32
      %73 = tpu.memref_slice %arg2[%72, %c0_i32_60] : memref<512x384xf32, #tpu.memory_space<any>> -> memref<1x384xf32, #tpu.memory_space<any>>
      %c3_i32_61 = arith.constant 3 : i32
      %c0_i32_62 = arith.constant 0 : i32
      %74 = tpu.memref_slice %arg13[%c3_i32_61, %c0_i32_62] : memref<8x384xf32, #tpu.memory_space<vmem>> -> memref<1x384xf32, #tpu.memory_space<vmem>>
      %75 = tpu.memref_slice %arg15[%c3_i32_59] : memref<8x!tpu.dma_semaphore, #tpu.memory_space<semaphore_mem>> -> memref<1x!tpu.dma_semaphore, #tpu.memory_space<semaphore_mem>>
      %76 = tpu.memref_squeeze %75 : memref<1x!tpu.dma_semaphore, #tpu.memory_space<semaphore_mem>> -> memref<!tpu.dma_semaphore, #tpu.memory_space<semaphore_mem>>
      tpu.wait_dma2 semaphore(%76 : memref<!tpu.dma_semaphore, #tpu.memory_space<semaphore_mem>>) src(%73 : memref<1x384xf32, #tpu.memory_space<any>>) dst(%74 : memref<1x384xf32, #tpu.memory_space<vmem>>)
      %c4_63 = arith.constant 4 : index
      %77 = memref.load %arg1[%c4_63] : memref<8xi32, #tpu.memory_space<smem>>
      %c4_i32_64 = arith.constant 4 : i32
      %c0_i32_65 = arith.constant 0 : i32
      %78 = tpu.memref_slice %arg2[%77, %c0_i32_65] : memref<512x384xf32, #tpu.memory_space<any>> -> memref<1x384xf32, #tpu.memory_space<any>>
      %c4_i32_66 = arith.constant 4 : i32
      %c0_i32_67 = arith.constant 0 : i32
      %79 = tpu.memref_slice %arg13[%c4_i32_66, %c0_i32_67] : memref<8x384xf32, #tpu.memory_space<vmem>> -> memref<1x384xf32, #tpu.memory_space<vmem>>
      %80 = tpu.memref_slice %arg15[%c4_i32_64] : memref<8x!tpu.dma_semaphore, #tpu.memory_space<semaphore_mem>> -> memref<1x!tpu.dma_semaphore, #tpu.memory_space<semaphore_mem>>
      %81 = tpu.memref_squeeze %80 : memref<1x!tpu.dma_semaphore, #tpu.memory_space<semaphore_mem>> -> memref<!tpu.dma_semaphore, #tpu.memory_space<semaphore_mem>>
      tpu.wait_dma2 semaphore(%81 : memref<!tpu.dma_semaphore, #tpu.memory_space<semaphore_mem>>) src(%78 : memref<1x384xf32, #tpu.memory_space<any>>) dst(%79 : memref<1x384xf32, #tpu.memory_space<vmem>>)
      %c5_68 = arith.constant 5 : index
      %82 = memref.load %arg1[%c5_68] : memref<8xi32, #tpu.memory_space<smem>>
      %c5_i32_69 = arith.constant 5 : i32
      %c0_i32_70 = arith.constant 0 : i32
      %83 = tpu.memref_slice %arg2[%82, %c0_i32_70] : memref<512x384xf32, #tpu.memory_space<any>> -> memref<1x384xf32, #tpu.memory_space<any>>
      %c5_i32_71 = arith.constant 5 : i32
      %c0_i32_72 = arith.constant 0 : i32
      %84 = tpu.memref_slice %arg13[%c5_i32_71, %c0_i32_72] : memref<8x384xf32, #tpu.memory_space<vmem>> -> memref<1x384xf32, #tpu.memory_space<vmem>>
      %85 = tpu.memref_slice %arg15[%c5_i32_69] : memref<8x!tpu.dma_semaphore, #tpu.memory_space<semaphore_mem>> -> memref<1x!tpu.dma_semaphore, #tpu.memory_space<semaphore_mem>>
      %86 = tpu.memref_squeeze %85 : memref<1x!tpu.dma_semaphore, #tpu.memory_space<semaphore_mem>> -> memref<!tpu.dma_semaphore, #tpu.memory_space<semaphore_mem>>
      tpu.wait_dma2 semaphore(%86 : memref<!tpu.dma_semaphore, #tpu.memory_space<semaphore_mem>>) src(%83 : memref<1x384xf32, #tpu.memory_space<any>>) dst(%84 : memref<1x384xf32, #tpu.memory_space<vmem>>)
      %c6_73 = arith.constant 6 : index
      %87 = memref.load %arg1[%c6_73] : memref<8xi32, #tpu.memory_space<smem>>
      %c6_i32_74 = arith.constant 6 : i32
      %c0_i32_75 = arith.constant 0 : i32
      %88 = tpu.memref_slice %arg2[%87, %c0_i32_75] : memref<512x384xf32, #tpu.memory_space<any>> -> memref<1x384xf32, #tpu.memory_space<any>>
      %c6_i32_76 = arith.constant 6 : i32
      %c0_i32_77 = arith.constant 0 : i32
      %89 = tpu.memref_slice %arg13[%c6_i32_76, %c0_i32_77] : memref<8x384xf32, #tpu.memory_space<vmem>> -> memref<1x384xf32, #tpu.memory_space<vmem>>
      %90 = tpu.memref_slice %arg15[%c6_i32_74] : memref<8x!tpu.dma_semaphore, #tpu.memory_space<semaphore_mem>> -> memref<1x!tpu.dma_semaphore, #tpu.memory_space<semaphore_mem>>
      %91 = tpu.memref_squeeze %90 : memref<1x!tpu.dma_semaphore, #tpu.memory_space<semaphore_mem>> -> memref<!tpu.dma_semaphore, #tpu.memory_space<semaphore_mem>>
      tpu.wait_dma2 semaphore(%91 : memref<!tpu.dma_semaphore, #tpu.memory_space<semaphore_mem>>) src(%88 : memref<1x384xf32, #tpu.memory_space<any>>) dst(%89 : memref<1x384xf32, #tpu.memory_space<vmem>>)
      %c7_78 = arith.constant 7 : index
      %92 = memref.load %arg1[%c7_78] : memref<8xi32, #tpu.memory_space<smem>>
      %c7_i32_79 = arith.constant 7 : i32
      %c0_i32_80 = arith.constant 0 : i32
      %93 = tpu.memref_slice %arg2[%92, %c0_i32_80] : memref<512x384xf32, #tpu.memory_space<any>> -> memref<1x384xf32, #tpu.memory_space<any>>
      %c7_i32_81 = arith.constant 7 : i32
      %c0_i32_82 = arith.constant 0 : i32
      %94 = tpu.memref_slice %arg13[%c7_i32_81, %c0_i32_82] : memref<8x384xf32, #tpu.memory_space<vmem>> -> memref<1x384xf32, #tpu.memory_space<vmem>>
      %95 = tpu.memref_slice %arg15[%c7_i32_79] : memref<8x!tpu.dma_semaphore, #tpu.memory_space<semaphore_mem>> -> memref<1x!tpu.dma_semaphore, #tpu.memory_space<semaphore_mem>>
      %96 = tpu.memref_squeeze %95 : memref<1x!tpu.dma_semaphore, #tpu.memory_space<semaphore_mem>> -> memref<!tpu.dma_semaphore, #tpu.memory_space<semaphore_mem>>
      tpu.wait_dma2 semaphore(%96 : memref<!tpu.dma_semaphore, #tpu.memory_space<semaphore_mem>>) src(%93 : memref<1x384xf32, #tpu.memory_space<any>>) dst(%94 : memref<1x384xf32, #tpu.memory_space<vmem>>)
      %c0_83 = arith.constant 0 : index
      %c0_84 = arith.constant 0 : index
      %97 = vector.load %arg13[%c0_83, %c0_84] : memref<8x384xf32, #tpu.memory_space<vmem>>, vector<8x384xf32>
      %c0_85 = arith.constant 0 : index
      %c0_86 = arith.constant 0 : index
      %98 = vector.load %arg5[%c0_85, %c0_86] : memref<4x128xf32, #tpu.memory_space<vmem>>, vector<4x128xf32>
      %99 = vector.extract_strided_slice %97 {offsets = [0, 0], sizes = [8, 128], strides = [1, 1]} : vector<8x384xf32> to vector<8x128xf32>
      %100 = vector.extract_strided_slice %56 {offsets = [0, 0], sizes = [8, 128], strides = [1, 1]} : vector<8x384xf32> to vector<8x128xf32>
      %101 = arith.addf %99, %100 : vector<8x128xf32>
      %102 = vector.extract_strided_slice %98 {offsets = [0, 0], sizes = [1, 128], strides = [1, 1]} : vector<4x128xf32> to vector<1x128xf32>
      %103 = vector.shape_cast %102 : vector<1x128xf32> to vector<128xf32>
      %104 = vector.shape_cast %103 : vector<128xf32> to vector<1x128xf32>
      %105 = vector.broadcast %104 : vector<1x128xf32> to vector<8x128xf32>
      %106 = arith.addf %101, %105 : vector<8x128xf32>
      %107 = arith.negf %106 : vector<8x128xf32>
      %108 = math.exp %107 : vector<8x128xf32>
      %cst_87 = arith.constant 1.000000e+00 : f32
      %109 = vector.broadcast %cst_87 : f32 to vector<8x128xf32>
      %110 = arith.addf %109, %108 : vector<8x128xf32>
      %111 = arith.divf %109, %110 : vector<8x128xf32>
      %112 = vector.extract_strided_slice %97 {offsets = [0, 128], sizes = [8, 128], strides = [1, 1]} : vector<8x384xf32> to vector<8x128xf32>
      %113 = vector.extract_strided_slice %56 {offsets = [0, 128], sizes = [8, 128], strides = [1, 1]} : vector<8x384xf32> to vector<8x128xf32>
      %114 = arith.addf %112, %113 : vector<8x128xf32>
      %115 = vector.extract_strided_slice %98 {offsets = [1, 0], sizes = [1, 128], strides = [1, 1]} : vector<4x128xf32> to vector<1x128xf32>
      %116 = vector.shape_cast %115 : vector<1x128xf32> to vector<128xf32>
      %117 = vector.shape_cast %116 : vector<128xf32> to vector<1x128xf32>
      %118 = vector.broadcast %117 : vector<1x128xf32> to vector<8x128xf32>
      %119 = arith.addf %114, %118 : vector<8x128xf32>
      %120 = arith.negf %119 : vector<8x128xf32>
      %121 = math.exp %120 : vector<8x128xf32>
      %cst_88 = arith.constant 1.000000e+00 : f32
      %122 = vector.broadcast %cst_88 : f32 to vector<8x128xf32>
      %123 = arith.addf %122, %121 : vector<8x128xf32>
      %124 = arith.divf %122, %123 : vector<8x128xf32>
      %125 = vector.extract_strided_slice %97 {offsets = [0, 256], sizes = [8, 128], strides = [1, 1]} : vector<8x384xf32> to vector<8x128xf32>
      %126 = vector.extract_strided_slice %98 {offsets = [2, 0], sizes = [1, 128], strides = [1, 1]} : vector<4x128xf32> to vector<1x128xf32>
      %127 = vector.shape_cast %126 : vector<1x128xf32> to vector<128xf32>
      %128 = vector.shape_cast %127 : vector<128xf32> to vector<1x128xf32>
      %129 = vector.broadcast %128 : vector<1x128xf32> to vector<8x128xf32>
      %130 = arith.addf %125, %129 : vector<8x128xf32>
      %131 = vector.extract_strided_slice %56 {offsets = [0, 256], sizes = [8, 128], strides = [1, 1]} : vector<8x384xf32> to vector<8x128xf32>
      %132 = vector.extract_strided_slice %98 {offsets = [3, 0], sizes = [1, 128], strides = [1, 1]} : vector<4x128xf32> to vector<1x128xf32>
      %133 = vector.shape_cast %132 : vector<1x128xf32> to vector<128xf32>
      %134 = vector.shape_cast %133 : vector<128xf32> to vector<1x128xf32>
      %135 = vector.broadcast %134 : vector<1x128xf32> to vector<8x128xf32>
      %136 = arith.addf %131, %135 : vector<8x128xf32>
      %137 = arith.mulf %111, %136 : vector<8x128xf32>
      %138 = arith.addf %130, %137 : vector<8x128xf32>
      %139 = math.tanh %138 : vector<8x128xf32>
      %cst_89 = arith.constant 1.000000e+00 : f32
      %140 = vector.broadcast %cst_89 : f32 to vector<8x128xf32>
      %141 = arith.subf %140, %124 : vector<8x128xf32>
      %142 = arith.mulf %141, %139 : vector<8x128xf32>
      %143 = arith.mulf %124, %52 : vector<8x128xf32>
      %144 = arith.addf %142, %143 : vector<8x128xf32>
      %c0_90 = arith.constant 0 : index
      %c0_91 = arith.constant 0 : index
      %145 = vector.load %arg8[%c0_90, %c0_91] : memref<4x128xf32, #tpu.memory_space<vmem>>, vector<4x128xf32>
      %c0_92 = arith.constant 0 : index
      %c0_93 = arith.constant 0 : index
      %146 = vector.load %arg6[%c0_92, %c0_93] : memref<128x384xf32, #tpu.memory_space<vmem>>, vector<128x384xf32>
      %cst_94 = arith.constant dense<0.000000e+00> : vector<8x384xf32>
      %147 = tpu.matmul %144, %146, %cst_94 {dimension_numbers = #tpu.dot_dimension_numbers<[1], [0], [0], [1], [0, 0, 1, 1], [], []>} : vector<8x128xf32>, vector<128x384xf32>, vector<8x384xf32> -> vector<8x384xf32>
      %c0_95 = arith.constant 0 : index
      %c0_96 = arith.constant 0 : index
      %148 = vector.load %arg7[%c0_95, %c0_96] : memref<128x384xf32, #tpu.memory_space<vmem>>, vector<128x384xf32>
      %cst_97 = arith.constant dense<0.000000e+00> : vector<8x384xf32>
      %149 = tpu.matmul %54, %148, %cst_97 {dimension_numbers = #tpu.dot_dimension_numbers<[1], [0], [0], [1], [0, 0, 1, 1], [], []>} : vector<8x128xf32>, vector<128x384xf32>, vector<8x384xf32> -> vector<8x384xf32>
      %150 = vector.extract_strided_slice %147 {offsets = [0, 0], sizes = [8, 128], strides = [1, 1]} : vector<8x384xf32> to vector<8x128xf32>
      %151 = vector.extract_strided_slice %149 {offsets = [0, 0], sizes = [8, 128], strides = [1, 1]} : vector<8x384xf32> to vector<8x128xf32>
      %152 = arith.addf %150, %151 : vector<8x128xf32>
      %153 = vector.extract_strided_slice %145 {offsets = [0, 0], sizes = [1, 128], strides = [1, 1]} : vector<4x128xf32> to vector<1x128xf32>
      %154 = vector.shape_cast %153 : vector<1x128xf32> to vector<128xf32>
      %155 = vector.shape_cast %154 : vector<128xf32> to vector<1x128xf32>
      %156 = vector.broadcast %155 : vector<1x128xf32> to vector<8x128xf32>
      %157 = arith.addf %152, %156 : vector<8x128xf32>
      %158 = arith.negf %157 : vector<8x128xf32>
      %159 = math.exp %158 : vector<8x128xf32>
      %cst_98 = arith.constant 1.000000e+00 : f32
      %160 = vector.broadcast %cst_98 : f32 to vector<8x128xf32>
      %161 = arith.addf %160, %159 : vector<8x128xf32>
      %162 = arith.divf %160, %161 : vector<8x128xf32>
      %163 = vector.extract_strided_slice %147 {offsets = [0, 128], sizes = [8, 128], strides = [1, 1]} : vector<8x384xf32> to vector<8x128xf32>
      %164 = vector.extract_strided_slice %149 {offsets = [0, 128], sizes = [8, 128], strides = [1, 1]} : vector<8x384xf32> to vector<8x128xf32>
      %165 = arith.addf %163, %164 : vector<8x128xf32>
      %166 = vector.extract_strided_slice %145 {offsets = [1, 0], sizes = [1, 128], strides = [1, 1]} : vector<4x128xf32> to vector<1x128xf32>
      %167 = vector.shape_cast %166 : vector<1x128xf32> to vector<128xf32>
      %168 = vector.shape_cast %167 : vector<128xf32> to vector<1x128xf32>
      %169 = vector.broadcast %168 : vector<1x128xf32> to vector<8x128xf32>
      %170 = arith.addf %165, %169 : vector<8x128xf32>
      %171 = arith.negf %170 : vector<8x128xf32>
      %172 = math.exp %171 : vector<8x128xf32>
      %cst_99 = arith.constant 1.000000e+00 : f32
      %173 = vector.broadcast %cst_99 : f32 to vector<8x128xf32>
      %174 = arith.addf %173, %172 : vector<8x128xf32>
      %175 = arith.divf %173, %174 : vector<8x128xf32>
      %176 = vector.extract_strided_slice %147 {offsets = [0, 256], sizes = [8, 128], strides = [1, 1]} : vector<8x384xf32> to vector<8x128xf32>
      %177 = vector.extract_strided_slice %145 {offsets = [2, 0], sizes = [1, 128], strides = [1, 1]} : vector<4x128xf32> to vector<1x128xf32>
      %178 = vector.shape_cast %177 : vector<1x128xf32> to vector<128xf32>
      %179 = vector.shape_cast %178 : vector<128xf32> to vector<1x128xf32>
      %180 = vector.broadcast %179 : vector<1x128xf32> to vector<8x128xf32>
      %181 = arith.addf %176, %180 : vector<8x128xf32>
      %182 = vector.extract_strided_slice %149 {offsets = [0, 256], sizes = [8, 128], strides = [1, 1]} : vector<8x384xf32> to vector<8x128xf32>
      %183 = vector.extract_strided_slice %145 {offsets = [3, 0], sizes = [1, 128], strides = [1, 1]} : vector<4x128xf32> to vector<1x128xf32>
      %184 = vector.shape_cast %183 : vector<1x128xf32> to vector<128xf32>
      %185 = vector.shape_cast %184 : vector<128xf32> to vector<1x128xf32>
      %186 = vector.broadcast %185 : vector<1x128xf32> to vector<8x128xf32>
      %187 = arith.addf %182, %186 : vector<8x128xf32>
      %188 = arith.mulf %162, %187 : vector<8x128xf32>
      %189 = arith.addf %181, %188 : vector<8x128xf32>
      %190 = math.tanh %189 : vector<8x128xf32>
      %cst_100 = arith.constant 1.000000e+00 : f32
      %191 = vector.broadcast %cst_100 : f32 to vector<8x128xf32>
      %192 = arith.subf %191, %175 : vector<8x128xf32>
      %193 = arith.mulf %192, %190 : vector<8x128xf32>
      %194 = arith.mulf %175, %54 : vector<8x128xf32>
      %195 = arith.addf %193, %194 : vector<8x128xf32>
      %c0_101 = arith.constant 0 : index
      %c0_102 = arith.constant 0 : index
      %c0_103 = arith.constant 0 : index
      %196 = vector.load %arg12[%c0_101, %c0_102, %c0_103] : memref<2x8x128xf32, #tpu.memory_space<vmem>>, vector<1x8x128xf32>
      %197 = vector.shape_cast %196 : vector<1x8x128xf32> to vector<8x128xf32>
      %198 = vector.shape_cast %144 : vector<8x128xf32> to vector<1x8x128xf32>
      tpu.vector_store %arg12[%c0_101, %c0_102, %c0_103], %198 {strides = array<i32>} : memref<2x8x128xf32, #tpu.memory_space<vmem>>, vector<1x8x128xf32>,
      %c1_104 = arith.constant 1 : index
      %c0_105 = arith.constant 0 : index
      %c0_106 = arith.constant 0 : index
      %199 = vector.load %arg12[%c1_104, %c0_105, %c0_106] : memref<2x8x128xf32, #tpu.memory_space<vmem>>, vector<1x8x128xf32>
      %200 = vector.shape_cast %199 : vector<1x8x128xf32> to vector<8x128xf32>
      %201 = vector.shape_cast %195 : vector<8x128xf32> to vector<1x8x128xf32>
      tpu.vector_store %arg12[%c1_104, %c0_105, %c0_106], %201 {strides = array<i32>} : memref<2x8x128xf32, #tpu.memory_space<vmem>>, vector<1x8x128xf32>,
      %c0_107 = arith.constant 0 : index
      %c0_108 = arith.constant 0 : index
      %202 = vector.load %arg14[%c0_107, %c0_108] : memref<8x128xf32, #tpu.memory_space<vmem>>, vector<8x128xf32>
      tpu.vector_store %arg14[%c0_107, %c0_108], %195 {strides = array<i32>} : memref<8x128xf32, #tpu.memory_space<vmem>>, vector<8x128xf32>,
    } else {
    }
    %c0 = arith.constant 0 : index
    %c0_1 = arith.constant 0 : index
    %3 = vector.load %arg14[%c0, %c0_1] : memref<8x128xf32, #tpu.memory_space<vmem>>, vector<8x128xf32>
    %c0_2 = arith.constant 0 : index
    %c0_3 = arith.constant 0 : index
    %4 = vector.load %arg9[%c0_2, %c0_3] : memref<128x256xf32, #tpu.memory_space<vmem>>, vector<128x256xf32>
    %cst = arith.constant dense<0.000000e+00> : vector<8x256xf32>
    %5 = tpu.matmul %3, %4, %cst {dimension_numbers = #tpu.dot_dimension_numbers<[1], [0], [0], [1], [0, 0, 1, 1], [], []>} : vector<8x128xf32>, vector<128x256xf32>, vector<8x256xf32> -> vector<8x256xf32>
    %c0_4 = arith.constant 0 : index
    %c0_5 = arith.constant 0 : index
    %6 = vector.load %arg10[%c0_4, %c0_5] : memref<1x256xf32, #tpu.memory_space<vmem>>, vector<1x256xf32>
    %7 = vector.broadcast %6 : vector<1x256xf32> to vector<8x256xf32>
    %8 = arith.addf %5, %7 : vector<8x256xf32>
    %9 = math.tanh %8 : vector<8x256xf32>
    %c0_6 = arith.constant 0 : index
    %c0_7 = arith.constant 0 : index
    %10 = vector.load %arg11[%c0_6, %c0_7] : memref<8x256xf32, #tpu.memory_space<vmem>>, vector<8x256xf32>
    tpu.vector_store %arg11[%c0_6, %c0_7], %9 {strides = array<i32>} : memref<8x256xf32, #tpu.memory_space<vmem>>, vector<8x256xf32>,
    return
  }
  func.func @transform_1(%arg0: i32, %arg1: memref<8xi32, #tpu.memory_space<smem>>) -> (i32, i32, i32) {
    %c0_i32 = arith.constant 0 : i32
    %c0_i32_0 = arith.constant 0 : i32
    %c0_i32_1 = arith.constant 0 : i32
    %c0_i32_2 = arith.constant 0 : i32
    return %c0_i32, %c0_i32_0, %c0_i32_1 : i32, i32, i32
  }
  func.func @transform_2(%arg0: i32, %arg1: memref<8xi32, #tpu.memory_space<smem>>) -> (i32, i32) {
    %c0_i32 = arith.constant 0 : i32
    %c0_i32_0 = arith.constant 0 : i32
    %c0_i32_1 = arith.constant 0 : i32
    return %c0_i32, %c0_i32_0 : i32, i32
  }
  func.func @transform_3(%arg0: i32, %arg1: memref<8xi32, #tpu.memory_space<smem>>) -> (i32, i32) {
    %c0_i32 = arith.constant 0 : i32
    %c0_i32_0 = arith.constant 0 : i32
    %c0_i32_1 = arith.constant 0 : i32
    return %c0_i32, %c0_i32_0 : i32, i32
  }
  func.func @transform_4(%arg0: i32, %arg1: memref<8xi32, #tpu.memory_space<smem>>) -> (i32, i32) {
    %c0_i32 = arith.constant 0 : i32
    %c0_i32_0 = arith.constant 0 : i32
    %c0_i32_1 = arith.constant 0 : i32
    return %c0_i32, %c0_i32_0 : i32, i32
  }
  func.func @transform_5(%arg0: i32, %arg1: memref<8xi32, #tpu.memory_space<smem>>) -> (i32, i32) {
    %c0_i32 = arith.constant 0 : i32
    %c0_i32_0 = arith.constant 0 : i32
    %c0_i32_1 = arith.constant 0 : i32
    return %c0_i32, %c0_i32_0 : i32, i32
  }
  func.func @transform_6(%arg0: i32, %arg1: memref<8xi32, #tpu.memory_space<smem>>) -> (i32, i32) {
    %c0_i32 = arith.constant 0 : i32
    %c0_i32_0 = arith.constant 0 : i32
    %c0_i32_1 = arith.constant 0 : i32
    return %c0_i32, %c0_i32_0 : i32, i32
  }
  func.func @transform_7(%arg0: i32, %arg1: memref<8xi32, #tpu.memory_space<smem>>) -> (i32, i32) {
    %c0_i32 = arith.constant 0 : i32
    %c0_i32_0 = arith.constant 0 : i32
    return %c0_i32, %arg0 : i32, i32
  }
  func.func @transform_8(%arg0: i32, %arg1: memref<8xi32, #tpu.memory_space<smem>>) -> (i32, i32) {
    %c0_i32 = arith.constant 0 : i32
    %c0_i32_0 = arith.constant 0 : i32
    return %c0_i32, %arg0 : i32, i32
  }
  func.func @transform_9(%arg0: i32, %arg1: memref<8xi32, #tpu.memory_space<smem>>) -> (i32, i32) {
    %c0_i32 = arith.constant 0 : i32
    %c0_i32_0 = arith.constant 0 : i32
    return %c0_i32, %arg0 : i32, i32
  }
  func.func @transform_10(%arg0: i32, %arg1: memref<8xi32, #tpu.memory_space<smem>>) -> (i32, i32, i32) {
    %c0_i32 = arith.constant 0 : i32
    %c0_i32_0 = arith.constant 0 : i32
    %c0_i32_1 = arith.constant 0 : i32
    %c0_i32_2 = arith.constant 0 : i32
    return %c0_i32, %c0_i32_0, %c0_i32_1 : i32, i32, i32
  }
}

</mosaic_0001>

<llo_original>
// kernel: simple_gru_forward.1
$region0: #{simple_gru_forward.1}
  #allocation0 [shape = 'u32[]', space=smem, size = 0x4, offset = 0x4, fixed_abs, tag = 'smem constant byte address 0x4 - core index']
  #allocation1 [shape = 'u32[72,128]{1,0:T(1,128)}', space=vmem, size = 0x9000, scoped, tag = 'internal scratch']
  #allocation2 [shape = 'f32[8,384]{1,0:T(8,128)}', space=vmem, size = 0x3000, scoped, tag = 'scratch operand']
  #allocation3 [shape = 'f32[8,128]{1,0:T(8,128)}', space=vmem, size = 0x1000, scoped, tag = 'scratch operand']
  #allocation4 [shape = 's32[8]{0}', space=sflag, size = 0x20, scoped, tag = 'scratch operand']
  #allocation5 [shape = 's32[1]{0}', space=sflag, size = 0x4, scoped, tag = 'scoped memory for simple_gru_forward.1']
  #allocation6 [shape = 'u8[512]{0}', space=smem, size = 0x200, scoped, tag = 'prefetched SMEM operand 0']
  #allocation20 [shape = 's32[]', space=sflag, size = 0x4, offset = 0, fixed_abs, tag = 'sflag constant byte address 0x0 - dummy sync flag']
  #allocation21 [shape = 's32[]', space=sflag, size = 0x4, offset = 0, fixed_abs, tag = 'sflag constant byte address 0x0 - dummy sync flag']
  #allocation22 [shape = 's32[]', space=sflag, size = 0x4, offset = 0, fixed_abs, tag = 'sflag constant byte address 0x0 - dummy sync flag']
  #allocation23 [shape = 's32[]', space=sflag, size = 0x4, offset = 0, fixed_abs, tag = 'sflag constant byte address 0x0 - dummy sync flag']
  #allocation24 [shape = 's32[]', space=sflag, size = 0x4, offset = 0, fixed_abs, tag = 'sflag constant byte address 0x0 - dummy sync flag']
  #allocation25 [shape = 's32[]', space=sflag, size = 0x4, offset = 0, fixed_abs, tag = 'sflag constant byte address 0x0 - dummy sync flag']
  #allocation26 [shape = 's32[]', space=sflag, size = 0x4, offset = 0, fixed_abs, tag = 'sflag constant byte address 0x0 - dummy sync flag']
  #allocation27 [shape = 's32[]', space=sflag, size = 0x4, offset = 0, fixed_abs, tag = 'sflag constant byte address 0x0 - dummy sync flag']
  %s0 = inlined_call_operand.vmem [shape: s32[8], index: 0, kind: input, shape index: {}]
  %s1 = inlined_call_operand.hbm [shape: f32[512,384], index: 1, kind: input, shape index: {}]
  %s2 = inlined_call_operand.hbm [shape: f32[2,8,128], index: 2, kind: input, shape index: {}]
  %s3 = inlined_call_operand.hbm [shape: f32[128,384], index: 3, kind: input, shape index: {}]
  %s4 = inlined_call_operand.vmem [shape: f32[4,128], index: 4, kind: input, shape index: {}]
  %s5 = inlined_call_operand.hbm [shape: f32[128,384], index: 5, kind: input, shape index: {}]
  %s6 = inlined_call_operand.hbm [shape: f32[128,384], index: 6, kind: input, shape index: {}]
  %s7 = inlined_call_operand.hbm [shape: f32[4,128], index: 7, kind: input, shape index: {}]
  %s8 = inlined_call_operand.hbm [shape: f32[128,512], index: 8, kind: input, shape index: {}]
  %s9 = inlined_call_operand.hbm [shape: f32[1,512], index: 9, kind: input, shape index: {}]
  %s10 = inlined_call_operand.hbm [shape: f32[8,512], index: 10, kind: output, shape index: {0}]
  %s11 = inlined_call_operand.vmem [shape: f32[2,8,128], index: 11, kind: output, shape index: {1}]
  %12 = xla_tuple %s10, %s11
  %s13 = sld [smem:[#allocation0]]
  $region105: #{simple_gru_forward.1} parent=0
    _
  %s15 = ssub.s32 1, %s13
  %s16 = scalar_select 0, %s15, %s13
  %s18 = sshll.u32 %s0, 4
  %s19 = int_to_ptr.vmem [resolvable:$true] %s18
  %21 = dma.vmem_to_smem %s19, 16, [#allocation6], [#allocation5]
  %23 = dma.done [#allocation5], 16
  %24 = sfence
  $region1: #{simple_gru_forward.1} parent=0
    #allocation7 [shape = 'u8[8192]{0}', space=vmem, size = 0x2000, scoped, tag = 'input window, operand 2, single buffered']
    #allocation8 [shape = 's32[2]{0}', space=sflag, size = 0x8, scoped, tag = 'scoped memory for simple_gru_forward.1']
    #allocation9 [shape = 's32[2]{0}', space=sflag, size = 0x8, scoped, tag = 'scoped memory for simple_gru_forward.1']
    #allocation10 [shape = 'u8[196608]{0}', space=vmem, size = 0x30000, scoped, tag = 'input window, operand 3, single buffered']
    #allocation11 [shape = 's32[1]{0}', space=sflag, size = 0x4, scoped, tag = 'scoped memory for simple_gru_forward.1']
    #allocation12 [shape = 'u8[196608]{0}', space=vmem, size = 0x30000, scoped, tag = 'input window, operand 5, single buffered']
    #allocation13 [shape = 'u8[196608]{0}', space=vmem, size = 0x30000, scoped, tag = 'input window, operand 6, single buffered']
    #allocation14 [shape = 's32[1]{0}', space=sflag, size = 0x4, scoped, tag = 'scoped memory for simple_gru_forward.1']
    #allocation15 [shape = 'u8[2048]{0}', space=vmem, size = 0x800, scoped, tag = 'input window, operand 7, single buffered']
    #allocation16 [shape = 'u8[262144]{0}', space=vmem, size = 0x40000, scoped, tag = 'input window, operand 8']
    #allocation17 [shape = 's32[2]{0}', space=sflag, size = 0x8, scoped, tag = 'scoped memory for simple_gru_forward.1']
    #allocation18 [shape = 'u8[2048]{0}', space=vmem, size = 0x800, scoped, tag = 'input window, operand 9']
    #allocation19 [shape = 'u8[16384]{0}', space=vmem, size = 0x4000, scoped, tag = 'output window, operand 0']
    %25 = vsyncpa [#allocation8], 0
    %26 = vsyncpa [#allocation11], 0
    %27 = vsyncpa [#allocation14], 0
    %28 = vsyncpa [#allocation17], 0
    %s29 = scalar_lea.sflag [#allocation17], 1
    %30 = vsyncpa %s29, 0
    %31 = vsyncpa [#allocation9], 0
    %s32 = scalar_lea.sflag [#allocation9], 1
    %33 = vsyncpa %s32, 0
    loop: start=0, step=1, limit=4
    $region2: #{simple_gru_forward.1} parent=1 // loop_pre_header
      _
    $region3: #{simple_gru_forward.1} parent=1 // loop_header
      %s35 = sphi 0, %s39
      %p36 = scmp.ge.s32.totalorder %s35, 4
      %s43 = sphi 0, %s43
      %s45 = sphi 0, %s43
      %s46 = sphi 0, %s45
      %s60 = sphi 0, %s46
      %s64 = sphi 0, %s64
      %s66 = sphi 0, %s64
      %s67 = sphi 0, %s66
      %s81 = sphi 0, %s67
      %s85 = sphi 0, %s85
      %s87 = sphi 0, %s85
      %s88 = sphi 0, %s87
      %s102 = sphi 0, %s88
      %s106 = sphi 0, %s106
      %s108 = sphi 0, %s106
      %s109 = sphi 0, %s108
      %s123 = sphi 0, %s109
      %s127 = sphi 0, %s127
      %s129 = sphi 0, %s127
      %s130 = sphi 0, %s129
      %s144 = sphi 0, %s130
      %s148 = sphi 0, %s148
      %s150 = sphi 0, %s148
      %s151 = sphi 0, %s150
      %s165 = sphi 0, %s151
      %s171 = sphi 0, %s173
      %s174 = sphi 0, %s171
      %s175 = sphi 0, %s174
      %s191 = sphi 0, %s175
      %s197 = sphi 0, %s199
      %s200 = sphi 0, %s197
      %s201 = sphi 0, %s200
      %s217 = sphi 0, %s201
      %s223 = sphi 0, %s225
      %s226 = sphi 0, %s223
      %s227 = sphi 0, %s226
      %s243 = sphi 0, %s227
      %s247 = sphi 0, %s247
      %s249 = sphi 0, %s247
      %s250 = sphi 0, %s249
      %s264 = sphi 0, %s250
    $region4: #{simple_gru_forward.1} parent=1 // loop_header_branch
      %38 = sbr.rel (%p36) target = $region8
    $region5: #{simple_gru_forward.1} parent=1 // loop_body
      %s40 = ssub.s32 %s35, 1
      %s41 = ssub.s32 %s35, 2
      %s42 = sadd.s32 %s35, 1
      %s44 = sadd.s32 %s43, 1
      %p47 = scmp.eq.s32.totalorder %s35, 1
      %p48 = scmp.ne.s32.totalorder %s43, %s45
      %p49 = scmp.eq.s32.totalorder %s35, 0
      %p50 = por %p48, %p49
      %p51 = scmp.ne.s32.totalorder %s43, %s45
      %p52 = scmp.eq.s32.totalorder %s40, 1
      %p53 = por %p51, %p52
      %p54 = scmp.ne.s32.totalorder %s45, %s46
      %p55 = scmp.eq.s32.totalorder %s40, 0
      %p56 = por %p54, %p55
      %p57 = scmp.ne.s32.totalorder %s45, %s46
      %p58 = scmp.eq.s32.totalorder %s41, 1
      %p59 = por %p57, %p58
      %p61 = scmp.ne.s32.totalorder %s46, %s60
      %p62 = scmp.eq.s32.totalorder %s41, 0
      %p63 = por %p61, %p62
      %s65 = sadd.s32 %s64, 1
      %p68 = scmp.eq.s32.totalorder %s35, 1
      %p69 = scmp.ne.s32.totalorder %s64, %s66
      %p70 = scmp.eq.s32.totalorder %s35, 0
      %p71 = por %p69, %p70
      %p72 = scmp.ne.s32.totalorder %s64, %s66
      %p73 = scmp.eq.s32.totalorder %s40, 1
      %p74 = por %p72, %p73
      %p75 = scmp.ne.s32.totalorder %s66, %s67
      %p76 = scmp.eq.s32.totalorder %s40, 0
      %p77 = por %p75, %p76
      %p78 = scmp.ne.s32.totalorder %s66, %s67
      %p79 = scmp.eq.s32.totalorder %s41, 1
      %p80 = por %p78, %p79
      %p82 = scmp.ne.s32.totalorder %s67, %s81
      %p83 = scmp.eq.s32.totalorder %s41, 0
      %p84 = por %p82, %p83
      %s86 = sadd.s32 %s85, 1
      %p89 = scmp.eq.s32.totalorder %s35, 1
      %p90 = scmp.ne.s32.totalorder %s85, %s87
      %p91 = scmp.eq.s32.totalorder %s35, 0
      %p92 = por %p90, %p91
      %p93 = scmp.ne.s32.totalorder %s85, %s87
      %p94 = scmp.eq.s32.totalorder %s40, 1
      %p95 = por %p93, %p94
      %p96 = scmp.ne.s32.totalorder %s87, %s88
      %p97 = scmp.eq.s32.totalorder %s40, 0
      %p98 = por %p96, %p97
      %p99 = scmp.ne.s32.totalorder %s87, %s88
      %p100 = scmp.eq.s32.totalorder %s41, 1
      %p101 = por %p99, %p100
      %p103 = scmp.ne.s32.totalorder %s88, %s102
      %p104 = scmp.eq.s32.totalorder %s41, 0
      %p105 = por %p103, %p104
      %s107 = sadd.s32 %s106, 1
      %p110 = scmp.eq.s32.totalorder %s35, 1
      %p111 = scmp.ne.s32.totalorder %s106, %s108
      %p112 = scmp.eq.s32.totalorder %s35, 0
      %p113 = por %p111, %p112
      %p114 = scmp.ne.s32.totalorder %s106, %s108
      %p115 = scmp.eq.s32.totalorder %s40, 1
      %p116 = por %p114, %p115
      %p117 = scmp.ne.s32.totalorder %s108, %s109
      %p118 = scmp.eq.s32.totalorder %s40, 0
      %p119 = por %p117, %p118
      %p120 = scmp.ne.s32.totalorder %s108, %s109
      %p121 = scmp.eq.s32.totalorder %s41, 1
      %p122 = por %p120, %p121
      %p124 = scmp.ne.s32.totalorder %s109, %s123
      %p125 = scmp.eq.s32.totalorder %s41, 0
      %p126 = por %p124, %p125
      %s128 = sadd.s32 %s127, 1
      %p131 = scmp.eq.s32.totalorder %s35, 1
      %p132 = scmp.ne.s32.totalorder %s127, %s129
      %p133 = scmp.eq.s32.totalorder %s35, 0
      %p134 = por %p132, %p133
      %p135 = scmp.ne.s32.totalorder %s127, %s129
      %p136 = scmp.eq.s32.totalorder %s40, 1
      %p137 = por %p135, %p136
      %p138 = scmp.ne.s32.totalorder %s129, %s130
      %p139 = scmp.eq.s32.totalorder %s40, 0
      %p140 = por %p138, %p139
      %p141 = scmp.ne.s32.totalorder %s129, %s130
      %p142 = scmp.eq.s32.totalorder %s41, 1
      %p143 = por %p141, %p142
      %p145 = scmp.ne.s32.totalorder %s130, %s144
      %p146 = scmp.eq.s32.totalorder %s41, 0
      %p147 = por %p145, %p146
      %s149 = sadd.s32 %s148, 1
      %p152 = scmp.eq.s32.totalorder %s35, 1
      %p153 = scmp.ne.s32.totalorder %s148, %s150
      %p154 = scmp.eq.s32.totalorder %s35, 0
      %p155 = por %p153, %p154
      %p156 = scmp.ne.s32.totalorder %s148, %s150
      %p157 = scmp.eq.s32.totalorder %s40, 1
      %p158 = por %p156, %p157
      %p159 = scmp.ne.s32.totalorder %s150, %s151
      %p160 = scmp.eq.s32.totalorder %s40, 0
      %p161 = por %p159, %p160
      %p162 = scmp.ne.s32.totalorder %s150, %s151
      %p163 = scmp.eq.s32.totalorder %s41, 1
      %p164 = por %p162, %p163
      %p166 = scmp.ne.s32.totalorder %s151, %s165
      %p167 = scmp.eq.s32.totalorder %s41, 0
      %p168 = por %p166, %p167
      %s169 = ssub.s32 %s35, %s42
      %p170 = scmp.eq.s32.totalorder %s169, 0
      %s172 = sadd.s32 %s171, 1
      %s173 = scalar_select %p170, %s171, %s172
      %p176 = pneg %p170
      %p177 = scmp.eq.s32.totalorder %s35, 1
      %p178 = por %p176, %p177
      %p179 = scmp.ne.s32.totalorder %s171, %s174
      %p180 = scmp.eq.s32.totalorder %s35, 0
      %p181 = por %p179, %p180
      %p182 = scmp.ne.s32.totalorder %s171, %s174
      %p183 = scmp.eq.s32.totalorder %s40, 1
      %p184 = por %p182, %p183
      %p185 = scmp.ne.s32.totalorder %s174, %s175
      %p186 = scmp.eq.s32.totalorder %s40, 0
      %p187 = por %p185, %p186
      %p188 = scmp.ne.s32.totalorder %s174, %s175
      %p189 = scmp.eq.s32.totalorder %s41, 1
      %p190 = por %p188, %p189
      %p192 = scmp.ne.s32.totalorder %s175, %s191
      %p193 = scmp.eq.s32.totalorder %s41, 0
      %p194 = por %p192, %p193
      %s195 = ssub.s32 %s35, %s42
      %p196 = scmp.eq.s32.totalorder %s195, 0
      %s198 = sadd.s32 %s197, 1
      %s199 = scalar_select %p196, %s197, %s198
      %p202 = pneg %p196
      %p203 = scmp.eq.s32.totalorder %s35, 1
      %p204 = por %p202, %p203
      %p205 = scmp.ne.s32.totalorder %s197, %s200
      %p206 = scmp.eq.s32.totalorder %s35, 0
      %p207 = por %p205, %p206
      %p208 = scmp.ne.s32.totalorder %s197, %s200
      %p209 = scmp.eq.s32.totalorder %s40, 1
      %p210 = por %p208, %p209
      %p211 = scmp.ne.s32.totalorder %s200, %s201
      %p212 = scmp.eq.s32.totalorder %s40, 0
      %p213 = por %p211, %p212
      %p214 = scmp.ne.s32.totalorder %s200, %s201
      %p215 = scmp.eq.s32.totalorder %s41, 1
      %p216 = por %p214, %p215
      %p218 = scmp.ne.s32.totalorder %s201, %s217
      %p219 = scmp.eq.s32.totalorder %s41, 0
      %p220 = por %p218, %p219
      %s221 = ssub.s32 %s35, %s42
      %p222 = scmp.eq.s32.totalorder %s221, 0
      %s224 = sadd.s32 %s223, 1
      %s225 = scalar_select %p222, %s223, %s224
      %p228 = pneg %p222
      %p229 = scmp.eq.s32.totalorder %s35, 1
      %p230 = por %p228, %p229
      %p231 = scmp.ne.s32.totalorder %s223, %s226
      %p232 = scmp.eq.s32.totalorder %s35, 0
      %p233 = por %p231, %p232
      %p234 = scmp.ne.s32.totalorder %s223, %s226
      %p235 = scmp.eq.s32.totalorder %s40, 1
      %p236 = por %p234, %p235
      %p237 = scmp.ne.s32.totalorder %s226, %s227
      %p238 = scmp.eq.s32.totalorder %s40, 0
      %p239 = por %p237, %p238
      %p240 = scmp.ne.s32.totalorder %s226, %s227
      %p241 = scmp.eq.s32.totalorder %s41, 1
      %p242 = por %p240, %p241
      %p244 = scmp.ne.s32.totalorder %s227, %s243
      %p245 = scmp.eq.s32.totalorder %s41, 0
      %p246 = por %p244, %p245
      %s248 = sadd.s32 %s247, 1
      %p251 = scmp.eq.s32.totalorder %s35, 1
      %p252 = scmp.ne.s32.totalorder %s247, %s249
      %p253 = scmp.eq.s32.totalorder %s35, 0
      %p254 = por %p252, %p253
      %p255 = scmp.ne.s32.totalorder %s247, %s249
      %p256 = scmp.eq.s32.totalorder %s40, 1
      %p257 = por %p255, %p256
      %p258 = scmp.ne.s32.totalorder %s249, %s250
      %p259 = scmp.eq.s32.totalorder %s40, 0
      %p260 = por %p258, %p259
      %p261 = scmp.ne.s32.totalorder %s249, %s250
      %p262 = scmp.eq.s32.totalorder %s41, 1
      %p263 = por %p261, %p262
      %p265 = scmp.ne.s32.totalorder %s250, %s264
      %p266 = scmp.eq.s32.totalorder %s41, 0
      %p267 = por %p265, %p266
      %p268 = scmp.le.s32.totalorder 1, %s35
      %p269 = scmp.lt.s32.totalorder %s35, 3
      %p270 = pnand %p268, %p269
      %p271 = pneg %p270
      // Predicated region
      $region9: #{simple_gru_forward.1} parent=5 // pred_check
        _
      $region10: #{simple_gru_forward.1} parent=5 // pred_check_branch
        %273 = sbr.rel (%p270) target = $region12
      $region11: #{simple_gru_forward.1} parent=5 // pred_region
        %s274 = ssub.s32 %s35, 1
        // Predicated region
        $region13: #{simple_gru_forward.1} parent=11 // pred_check
          %p275 = pneg %p56
        $region14: #{simple_gru_forward.1} parent=11 // pred_check_branch
          %277 = sbr.rel (%p275) target = $region16
        $region15: #{simple_gru_forward.1} parent=11 // pred_region
          %279 = vsyncadd [#allocation8], 0
          %s280 = sshll.u32 %s2, 4
          %s281 = int_to_ptr.hbm [resolvable:$true] %s280
          %s282 = sshll.u32 [#allocation7], 4
          %s283 = int_to_ptr.vmem [resolvable:$true] %s282
          %288 = dma.hbm_to_vmem [thread:$0]  %s281, 256, %s283, [#allocation8], 128, 128, 8
        $region16: #{simple_gru_forward.1} parent=11 // pred_fallthru
          _
        // Predicated region
        $region17: #{simple_gru_forward.1} parent=11 // pred_check
          %p289 = pneg %p77
        $region18: #{simple_gru_forward.1} parent=11 // pred_check_branch
          %291 = sbr.rel (%p289) target = $region20
        $region19: #{simple_gru_forward.1} parent=11 // pred_region
          %293 = vsyncadd [#allocation11], 0
          %s294 = sshll.u32 %s3, 4
          %s295 = int_to_ptr.hbm [resolvable:$true] %s294
          %s296 = sshll.u32 [#allocation10], 4
          %s297 = int_to_ptr.vmem [resolvable:$true] %s296
          %302 = dma.hbm_to_vmem [thread:$0]  %s295, 6144, %s297, [#allocation11], 384, 384, 24
        $region20: #{simple_gru_forward.1} parent=11 // pred_fallthru
          _
        // Predicated region
        $region21: #{simple_gru_forward.1} parent=11 // pred_check
          %p303 = pneg %p98
        $region22: #{simple_gru_forward.1} parent=11 // pred_check_branch
          %305 = sbr.rel (%p303) target = $region24
        $region23: #{simple_gru_forward.1} parent=11 // pred_region
          _
        $region24: #{simple_gru_forward.1} parent=11 // pred_fallthru
          _
        // Predicated region
        $region25: #{simple_gru_forward.1} parent=11 // pred_check
          %p306 = pneg %p119
        $region26: #{simple_gru_forward.1} parent=11 // pred_check_branch
          %308 = sbr.rel (%p306) target = $region28
        $region27: #{simple_gru_forward.1} parent=11 // pred_region
          %310 = vsyncadd [#allocation11], 0
          %s311 = sshll.u32 %s5, 4
          %s312 = int_to_ptr.hbm [resolvable:$true] %s311
          %s313 = sshll.u32 [#allocation12], 4
          %s314 = int_to_ptr.vmem [resolvable:$true] %s313
          %319 = dma.hbm_to_vmem [thread:$0]  %s312, 6144, %s314, [#allocation11], 384, 384, 24
        $region28: #{simple_gru_forward.1} parent=11 // pred_fallthru
          _
        // Predicated region
        $region29: #{simple_gru_forward.1} parent=11 // pred_check
          %p320 = pneg %p140
        $region30: #{simple_gru_forward.1} parent=11 // pred_check_branch
          %322 = sbr.rel (%p320) target = $region32
        $region31: #{simple_gru_forward.1} parent=11 // pred_region
          %324 = vsyncadd [#allocation14], 0
          %s325 = sshll.u32 %s6, 4
          %s326 = int_to_ptr.hbm [resolvable:$true] %s325
          %s327 = sshll.u32 [#allocation13], 4
          %s328 = int_to_ptr.vmem [resolvable:$true] %s327
          %333 = dma.hbm_to_vmem [thread:$0]  %s326, 6144, %s328, [#allocation14], 384, 384, 24
        $region32: #{simple_gru_forward.1} parent=11 // pred_fallthru
          _
        // Predicated region
        $region33: #{simple_gru_forward.1} parent=11 // pred_check
          %p334 = pneg %p161
        $region34: #{simple_gru_forward.1} parent=11 // pred_check_branch
          %336 = sbr.rel (%p334) target = $region36
        $region35: #{simple_gru_forward.1} parent=11 // pred_region
          %338 = vsyncadd [#allocation14], 0
          %s340 = sshll.u32 %s7, 4
          %s341 = int_to_ptr.hbm [resolvable:$true] %s340
          %s342 = sshll.u32 [#allocation15], 4
          %s343 = int_to_ptr.vmem [resolvable:$true] %s342
          %345 = dma.hbm_to_vmem [thread:$0]  %s341, 64, %s343, [#allocation14]
        $region36: #{simple_gru_forward.1} parent=11 // pred_fallthru
          _
      $region12: #{simple_gru_forward.1} parent=5 // pred_fallthru
        _
      %p346 = scmp.lt.s32.totalorder %s35, 2
      // Predicated region
      $region37: #{simple_gru_forward.1} parent=5 // pred_check
        %p347 = pneg %p346
      $region38: #{simple_gru_forward.1} parent=5 // pred_check_branch
        %349 = sbr.rel (%p347) target = $region40
      $region39: #{simple_gru_forward.1} parent=5 // pred_region
        // Predicated region
        $region41: #{simple_gru_forward.1} parent=39 // pred_check
          %p350 = pneg %p181
        $region42: #{simple_gru_forward.1} parent=39 // pred_check_branch
          %352 = sbr.rel (%p350) target = $region44
        $region43: #{simple_gru_forward.1} parent=39 // pred_region
          %s353 = sand.u32 %s35, 1
          %s354 = scalar_lea.sflag [#allocation17], %s353
          %s355 = sand.u32 %s171, 1
          %s356 = smul.addr %s355, 256
          %s357 = scalar_lea.vmem [#allocation16], %s356
          %s358 = smul.u32 2, %s35
          %360 = vsyncadd %s354, 0
          %s361 = smul.addr %s358, 8
          %s362 = scalar_lea.hbm %s8, %s361
          %s363 = sshll.u32 %s362, 4
          %s364 = int_to_ptr.hbm [resolvable:$true] %s363
          %s365 = sshll.u32 %s357, 4
          %s366 = int_to_ptr.vmem [resolvable:$true] %s365
          %371 = dma.hbm_to_vmem [thread:$0]  %s364, 4096, %s366, %s354, 512, 256, 16
        $region44: #{simple_gru_forward.1} parent=39 // pred_fallthru
          _
        // Predicated region
        $region45: #{simple_gru_forward.1} parent=39 // pred_check
          %p372 = pneg %p207
        $region46: #{simple_gru_forward.1} parent=39 // pred_check_branch
          %374 = sbr.rel (%p372) target = $region48
        $region47: #{simple_gru_forward.1} parent=39 // pred_region
          %s375 = sand.u32 %s35, 1
          %s376 = scalar_lea.sflag [#allocation17], %s375
          %s377 = sand.u32 %s197, 1
          %s378 = smul.addr %s377, 2
          %s379 = scalar_lea.vmem [#allocation18], %s378
          %s380 = smul.u32 2, %s35
          %382 = vsyncadd %s376, 0
          %s383 = scalar_lea.hbm %s9, %s380
          %s385 = sshll.u32 %s383, 4
          %s386 = int_to_ptr.hbm [resolvable:$true] %s385
          %s387 = sshll.u32 %s379, 4
          %s388 = int_to_ptr.vmem [resolvable:$true] %s387
          %390 = dma.hbm_to_vmem [thread:$0]  %s386, 32, %s388, %s376
        $region48: #{simple_gru_forward.1} parent=39 // pred_fallthru
          _
      $region40: #{simple_gru_forward.1} parent=5 // pred_fallthru
        _
      %p391 = scmp.le.s32.totalorder 1, %s35
      %p392 = scmp.lt.s32.totalorder %s35, 3
      %p393 = pnand %p391, %p392
      %p394 = pneg %p393
      // Predicated region
      $region49: #{simple_gru_forward.1} parent=5 // pred_check
        _
      $region50: #{simple_gru_forward.1} parent=5 // pred_check_branch
        %396 = sbr.rel (%p393) target = $region52
      $region51: #{simple_gru_forward.1} parent=5 // pred_region
        %s397 = ssub.s32 %s35, 1
        // Predicated region
        $region53: #{simple_gru_forward.1} parent=51 // pred_check
          %p398 = pneg %p56
        $region54: #{simple_gru_forward.1} parent=51 // pred_check_branch
          %400 = sbr.rel (%p398) target = $region56
        $region55: #{simple_gru_forward.1} parent=51 // pred_region
          %402 = dma.done [#allocation8], 256
        $region56: #{simple_gru_forward.1} parent=51 // pred_fallthru
          _
        // Predicated region
        $region57: #{simple_gru_forward.1} parent=51 // pred_check
          %p403 = pneg %p77
        $region58: #{simple_gru_forward.1} parent=51 // pred_check_branch
          %405 = sbr.rel (%p403) target = $region60
        $region59: #{simple_gru_forward.1} parent=51 // pred_region
          %407 = dma.done [#allocation11], 6144
        $region60: #{simple_gru_forward.1} parent=51 // pred_fallthru
          _
        // Predicated region
        $region61: #{simple_gru_forward.1} parent=51 // pred_check
          %p408 = pneg %p119
        $region62: #{simple_gru_forward.1} parent=51 // pred_check_branch
          %410 = sbr.rel (%p408) target = $region64
        $region63: #{simple_gru_forward.1} parent=51 // pred_region
          %412 = dma.done [#allocation11], 6144
        $region64: #{simple_gru_forward.1} parent=51 // pred_fallthru
          _
        // Predicated region
        $region65: #{simple_gru_forward.1} parent=51 // pred_check
          %p413 = pneg %p140
        $region66: #{simple_gru_forward.1} parent=51 // pred_check_branch
          %415 = sbr.rel (%p413) target = $region68
        $region67: #{simple_gru_forward.1} parent=51 // pred_region
          %417 = dma.done [#allocation14], 6144
        $region68: #{simple_gru_forward.1} parent=51 // pred_fallthru
          _
        // Predicated region
        $region69: #{simple_gru_forward.1} parent=51 // pred_check
          %p418 = pneg %p161
        $region70: #{simple_gru_forward.1} parent=51 // pred_check_branch
          %420 = sbr.rel (%p418) target = $region72
        $region71: #{simple_gru_forward.1} parent=51 // pred_region
          %422 = dma.done [#allocation14], 64
        $region72: #{simple_gru_forward.1} parent=51 // pred_fallthru
          _
        %s423 = sand.u32 %s40, 1
        %s424 = scalar_lea.sflag [#allocation17], %s423
        %s425 = sand.u32 %s174, 1
        %s426 = smul.addr %s425, 256
        %s427 = scalar_lea.vmem [#allocation16], %s426
        // Predicated region
        $region73: #{simple_gru_forward.1} parent=51 // pred_check
          %p428 = pneg %p187
        $region74: #{simple_gru_forward.1} parent=51 // pred_check_branch
          %430 = sbr.rel (%p428) target = $region76
        $region75: #{simple_gru_forward.1} parent=51 // pred_region
          %432 = dma.done %s424, 4096
        $region76: #{simple_gru_forward.1} parent=51 // pred_fallthru
          _
        %s433 = sand.u32 %s40, 1
        %s434 = scalar_lea.sflag [#allocation17], %s433
        %s435 = sand.u32 %s200, 1
        %s436 = smul.addr %s435, 2
        %s437 = scalar_lea.vmem [#allocation18], %s436
        // Predicated region
        $region77: #{simple_gru_forward.1} parent=51 // pred_check
          %p438 = pneg %p213
        $region78: #{simple_gru_forward.1} parent=51 // pred_check_branch
          %440 = sbr.rel (%p438) target = $region80
        $region79: #{simple_gru_forward.1} parent=51 // pred_region
          %442 = dma.done %s434, 32
        $region80: #{simple_gru_forward.1} parent=51 // pred_fallthru
          _
        %p443 = pneg %p56
        %p444 = pneg %p53
        %p445 = pneg %p77
        %p446 = pneg %p74
        %p447 = pneg %p98
        %p448 = pneg %p95
        %p449 = pneg %p119
        %p450 = pneg %p116
        %p451 = pneg %p140
        %p452 = pneg %p137
        %p453 = pneg %p161
        %p454 = pneg %p158
        %s455 = sand.u32 %s40, 1
        %s456 = scalar_lea.sflag [#allocation17], %s455
        %s457 = sand.u32 %s174, 1
        %s458 = smul.addr %s457, 256
        %s459 = scalar_lea.vmem [#allocation16], %s458
        %p460 = pneg %p187
        %p461 = pneg %p184
        %s462 = sand.u32 %s40, 1
        %s463 = scalar_lea.sflag [#allocation17], %s462
        %s464 = sand.u32 %s200, 1
        %s465 = smul.addr %s464, 2
        %s466 = scalar_lea.vmem [#allocation18], %s465
        %p467 = pneg %p213
        %p468 = pneg %p210
        %p469 = pneg %p239
        %p470 = pneg %p236
        %s471 = sand.u32 %s226, 1
        %s472 = scalar_lea.sflag [#allocation9], %s471
        %s473 = sand.u32 %s226, 1
        %s474 = smul.addr %s473, 16
        %s475 = scalar_lea.vmem [#allocation19], %s474
        %p476 = pneg %p260
        %p477 = pneg %p257
        %s478 = smul.u32 2, %s40
        %s479 = smul.u32 2, %s40
        %s480 = smul.u32 2, %s40
        %p481 = scmp.eq.s32.totalorder %s40, 0
        // Predicated region
        $region81: #{simple_gru_forward.1} parent=51 // pred_check
          %p482 = pneg %p481
        $region82: #{simple_gru_forward.1} parent=51 // pred_check_branch
          %484 = sbr.rel (%p482) target = $region84
        $region83: #{simple_gru_forward.1} parent=51 // pred_region
          %s485 = sld [smem:[#allocation6]]
          %s486 = sshrl.u32 %s485, 3
          %s487 = sand.u32 %s485, 7
          %s488 = smul.u32 %s486, 24
          %s489 = sadd.s32 %s487, %s488
          %s490 = scalar_lea.hbm %s1, %s489
          %s491 = sshll.u32 %s490, 4
          %s492 = int_to_ptr.hbm [resolvable:$true] %s491
          %s493 = sshll.u32 [#allocation2], 4
          %s494 = int_to_ptr.vmem [resolvable:$true] %s493
          %498 = dma.hbm_to_vmem [thread:$0]  %s492, 48, %s494, [#allocation4], 128, 128, 1
          %s499 = sld [smem:[#allocation6 + $0x1]]
          %s500 = sshrl.u32 %s499, 3
          %s501 = sand.u32 %s499, 7
          %s502 = smul.u32 %s500, 24
          %s503 = sadd.s32 %s501, %s502
          %s504 = scalar_lea.hbm %s1, %s503
          %s505 = scalar_lea.vmem [#allocation2], 1
          %s506 = scalar_lea.sflag [#allocation4], 1
          %s507 = sshll.u32 %s504, 4
          %s508 = int_to_ptr.hbm [resolvable:$true] %s507
          %s509 = sshll.u32 %s505, 4
          %s510 = int_to_ptr.vmem [resolvable:$true] %s509
          %514 = dma.hbm_to_vmem [thread:$0]  %s508, 48, %s510, %s506, 128, 128, 1
          %s515 = sld [smem:[#allocation6 + $0x2]]
          %s516 = sshrl.u32 %s515, 3
          %s517 = sand.u32 %s515, 7
          %s518 = smul.u32 %s516, 24
          %s519 = sadd.s32 %s517, %s518
          %s520 = scalar_lea.hbm %s1, %s519
          %s521 = scalar_lea.vmem [#allocation2], 2
          %s522 = scalar_lea.sflag [#allocation4], 2
          %s523 = sshll.u32 %s520, 4
          %s524 = int_to_ptr.hbm [resolvable:$true] %s523
          %s525 = sshll.u32 %s521, 4
          %s526 = int_to_ptr.vmem [resolvable:$true] %s525
          %530 = dma.hbm_to_vmem [thread:$0]  %s524, 48, %s526, %s522, 128, 128, 1
          %s531 = sld [smem:[#allocation6 + $0x3]]
          %s532 = sshrl.u32 %s531, 3
          %s533 = sand.u32 %s531, 7
          %s534 = smul.u32 %s532, 24
          %s535 = sadd.s32 %s533, %s534
          %s536 = scalar_lea.hbm %s1, %s535
          %s537 = scalar_lea.vmem [#allocation2], 3
          %s538 = scalar_lea.sflag [#allocation4], 3
          %s539 = sshll.u32 %s536, 4
          %s540 = int_to_ptr.hbm [resolvable:$true] %s539
          %s541 = sshll.u32 %s537, 4
          %s542 = int_to_ptr.vmem [resolvable:$true] %s541
          %546 = dma.hbm_to_vmem [thread:$0]  %s540, 48, %s542, %s538, 128, 128, 1
          %s547 = sld [smem:[#allocation6 + $0x4]]
          %s548 = sshrl.u32 %s547, 3
          %s549 = sand.u32 %s547, 7
          %s550 = smul.u32 %s548, 24
          %s551 = sadd.s32 %s549, %s550
          %s552 = scalar_lea.hbm %s1, %s551
          %s553 = scalar_lea.vmem [#allocation2], 4
          %s554 = scalar_lea.sflag [#allocation4], 4
          %s555 = sshll.u32 %s552, 4
          %s556 = int_to_ptr.hbm [resolvable:$true] %s555
          %s557 = sshll.u32 %s553, 4
          %s558 = int_to_ptr.vmem [resolvable:$true] %s557
          %562 = dma.hbm_to_vmem [thread:$0]  %s556, 48, %s558, %s554, 128, 128, 1
          %s563 = sld [smem:[#allocation6 + $0x5]]
          %s564 = sshrl.u32 %s563, 3
          %s565 = sand.u32 %s563, 7
          %s566 = smul.u32 %s564, 24
          %s567 = sadd.s32 %s565, %s566
          %s568 = scalar_lea.hbm %s1, %s567
          %s569 = scalar_lea.vmem [#allocation2], 5
          %s570 = scalar_lea.sflag [#allocation4], 5
          %s571 = sshll.u32 %s568, 4
          %s572 = int_to_ptr.hbm [resolvable:$true] %s571
          %s573 = sshll.u32 %s569, 4
          %s574 = int_to_ptr.vmem [resolvable:$true] %s573
          %578 = dma.hbm_to_vmem [thread:$0]  %s572, 48, %s574, %s570, 128, 128, 1
          %s579 = sld [smem:[#allocation6 + $0x6]]
          %s580 = sshrl.u32 %s579, 3
          %s581 = sand.u32 %s579, 7
          %s582 = smul.u32 %s580, 24
          %s583 = sadd.s32 %s581, %s582
          %s584 = scalar_lea.hbm %s1, %s583
          %s585 = scalar_lea.vmem [#allocation2], 6
          %s586 = scalar_lea.sflag [#allocation4], 6
          %s587 = sshll.u32 %s584, 4
          %s588 = int_to_ptr.hbm [resolvable:$true] %s587
          %s589 = sshll.u32 %s585, 4
          %s590 = int_to_ptr.vmem [resolvable:$true] %s589
          %594 = dma.hbm_to_vmem [thread:$0]  %s588, 48, %s590, %s586, 128, 128, 1
          %s595 = sld [smem:[#allocation6 + $0x7]]
          %s596 = sshrl.u32 %s595, 3
          %s597 = sand.u32 %s595, 7
          %s598 = smul.u32 %s596, 24
          %s599 = sadd.s32 %s597, %s598
          %s600 = scalar_lea.hbm %s1, %s599
          %s601 = scalar_lea.vmem [#allocation2], 7
          %s602 = scalar_lea.sflag [#allocation4], 7
          %s603 = sshll.u32 %s600, 4
          %s604 = int_to_ptr.hbm [resolvable:$true] %s603
          %s605 = sshll.u32 %s601, 4
          %s606 = int_to_ptr.vmem [resolvable:$true] %s605
          %610 = dma.hbm_to_vmem [thread:$0]  %s604, 48, %s606, %s602, 128, 128, 1
          %v611 = vld [vmem:[#allocation7] sm:$0xff]
          %s612 = scalar_lea.vmem [#allocation7], 8
          %v613 = vld [vmem:[%s612] sm:$0xff]
          %v614 = vld [vmem:[#allocation10] sm:$0xff]
          %v615 = vld [vmem:[#allocation10 + $0x8] sm:$0xff]
          %v616 = vld [vmem:[#allocation10 + $0x10] sm:$0xff]
          %v617 = vld [vmem:[#allocation10 + $0x18] sm:$0xff]
          %v618 = vld [vmem:[#allocation10 + $0x20] sm:$0xff]
          %v619 = vld [vmem:[#allocation10 + $0x28] sm:$0xff]
          %v620 = vld [vmem:[#allocation10 + $0x30] sm:$0xff]
          %v621 = vld [vmem:[#allocation10 + $0x38] sm:$0xff]
          %v622 = vld [vmem:[#allocation10 + $0x40] sm:$0xff]
          %v623 = vld [vmem:[#allocation10 + $0x48] sm:$0xff]
          %v624 = vld [vmem:[#allocation10 + $0x50] sm:$0xff]
          %v625 = vld [vmem:[#allocation10 + $0x58] sm:$0xff]
          %v626 = vld [vmem:[#allocation10 + $0x60] sm:$0xff]
          %v627 = vld [vmem:[#allocation10 + $0x68] sm:$0xff]
          %v628 = vld [vmem:[#allocation10 + $0x70] sm:$0xff]
          %v629 = vld [vmem:[#allocation10 + $0x78] sm:$0xff]
          %v630 = vld [vmem:[#allocation10 + $0x80] sm:$0xff]
          %v631 = vld [vmem:[#allocation10 + $0x88] sm:$0xff]
          %v632 = vld [vmem:[#allocation10 + $0x90] sm:$0xff]
          %v633 = vld [vmem:[#allocation10 + $0x98] sm:$0xff]
          %v634 = vld [vmem:[#allocation10 + $0xa0] sm:$0xff]
          %v635 = vld [vmem:[#allocation10 + $0xa8] sm:$0xff]
          %v636 = vld [vmem:[#allocation10 + $0xb0] sm:$0xff]
          %v637 = vld [vmem:[#allocation10 + $0xb8] sm:$0xff]
          %v638 = vld [vmem:[#allocation10 + $0xc0] sm:$0xff]
          %v639 = vld [vmem:[#allocation10 + $0xc8] sm:$0xff]
          %v640 = vld [vmem:[#allocation10 + $0xd0] sm:$0xff]
          %v641 = vld [vmem:[#allocation10 + $0xd8] sm:$0xff]
          %v642 = vld [vmem:[#allocation10 + $0xe0] sm:$0xff]
          %v643 = vld [vmem:[#allocation10 + $0xe8] sm:$0xff]
          %v644 = vld [vmem:[#allocation10 + $0xf0] sm:$0xff]
          %v645 = vld [vmem:[#allocation10 + $0xf8] sm:$0xff]
          %v646 = vld [vmem:[#allocation10 + $0x100] sm:$0xff]
          %v647 = vld [vmem:[#allocation10 + $0x108] sm:$0xff]
          %v648 = vld [vmem:[#allocation10 + $0x110] sm:$0xff]
          %v649 = vld [vmem:[#allocation10 + $0x118] sm:$0xff]
          %v650 = vld [vmem:[#allocation10 + $0x120] sm:$0xff]
          %v651 = vld [vmem:[#allocation10 + $0x128] sm:$0xff]
          %v652 = vld [vmem:[#allocation10 + $0x130] sm:$0xff]
          %v653 = vld [vmem:[#allocation10 + $0x138] sm:$0xff]
          %v654 = vld [vmem:[#allocation10 + $0x140] sm:$0xff]
          %v655 = vld [vmem:[#allocation10 + $0x148] sm:$0xff]
          %v656 = vld [vmem:[#allocation10 + $0x150] sm:$0xff]
          %v657 = vld [vmem:[#allocation10 + $0x158] sm:$0xff]
          %v658 = vld [vmem:[#allocation10 + $0x160] sm:$0xff]
          %v659 = vld [vmem:[#allocation10 + $0x168] sm:$0xff]
          %v660 = vld [vmem:[#allocation10 + $0x170] sm:$0xff]
          %v661 = vld [vmem:[#allocation10 + $0x178] sm:$0xff]
          %662 = vmatpush.msra.mxu0 %v659
          %663 = vmatpush.msra.mxu0 %v656
          %664 = vmatpush.msra.mxu0 %v653
          %665 = vmatpush.msra.mxu0 %v650
          %666 = vmatpush.msra.mxu0 %v647
          %667 = vmatpush.msra.mxu0 %v644
          %668 = vmatpush.msra.mxu0 %v641
          %669 = vmatpush.msra.mxu0 %v638
          %670 = vmatpush.msra.mxu0 %v635
          %671 = vmatpush.msra.mxu0 %v632
          %672 = vmatpush.msra.mxu0 %v629
          %673 = vmatpush.msra.mxu0 %v626
          %674 = vmatpush.msra.mxu0 %v623
          %675 = vmatpush.msra.mxu0 %v620
          %676 = vmatpush.msra.mxu0 %v617
          %677 = vmatpush.msra.mxu0 %v614
          %678 = vmatmul.f32.gmra.mxu0 %v611
          %v679 = vpop.f32.mrf.mxu0
          %v680 = vadd.f32 0.0, %v679
          %681 = vdwg.mxu0
          %682 = vmatpush.msra.mxu0 %v660
          %683 = vmatpush.msra.mxu0 %v657
          %684 = vmatpush.msra.mxu0 %v654
          %685 = vmatpush.msra.mxu0 %v651
          %686 = vmatpush.msra.mxu0 %v648
          %687 = vmatpush.msra.mxu0 %v645
          %688 = vmatpush.msra.mxu0 %v642
          %689 = vmatpush.msra.mxu0 %v639
          %690 = vmatpush.msra.mxu0 %v636
          %691 = vmatpush.msra.mxu0 %v633
          %692 = vmatpush.msra.mxu0 %v630
          %693 = vmatpush.msra.mxu0 %v627
          %694 = vmatpush.msra.mxu0 %v624
          %695 = vmatpush.msra.mxu0 %v621
          %696 = vmatpush.msra.mxu0 %v618
          %697 = vmatpush.msra.mxu0 %v615
          %698 = vmatmul.f32.gmra.mxu0 %v611
          %v699 = vpop.f32.mrf.mxu0
          %v700 = vadd.f32 0.0, %v699
          %701 = vdwg.mxu0
          %702 = vmatpush.msra.mxu0 %v661
          %703 = vmatpush.msra.mxu0 %v658
          %704 = vmatpush.msra.mxu0 %v655
          %705 = vmatpush.msra.mxu0 %v652
          %706 = vmatpush.msra.mxu0 %v649
          %707 = vmatpush.msra.mxu0 %v646
          %708 = vmatpush.msra.mxu0 %v643
          %709 = vmatpush.msra.mxu0 %v640
          %710 = vmatpush.msra.mxu0 %v637
          %711 = vmatpush.msra.mxu0 %v634
          %712 = vmatpush.msra.mxu0 %v631
          %713 = vmatpush.msra.mxu0 %v628
          %714 = vmatpush.msra.mxu0 %v625
          %715 = vmatpush.msra.mxu0 %v622
          %716 = vmatpush.msra.mxu0 %v619
          %717 = vmatpush.msra.mxu0 %v616
          %718 = vmatmul.f32.gmra.mxu0 %v611
          %v719 = vpop.f32.mrf.mxu0
          %v720 = vadd.f32 0.0, %v719
          %721 = vdwg.mxu0
          %s722 = sld [smem:[#allocation6]]
          %s723 = smul.u32 1, 3
          %s724 = sshll.u32 %s723, 4
          %725 = dma.done [#allocation4], %s724
          %s726 = sld [smem:[#allocation6 + $0x1]]
          %s727 = sshll.u32 %s723, 4
          %728 = dma.done %s506, %s727
          %s729 = sld [smem:[#allocation6 + $0x2]]
          %s730 = sshll.u32 %s723, 4
          %731 = dma.done %s522, %s730
          %s732 = sld [smem:[#allocation6 + $0x3]]
          %s733 = sshll.u32 %s723, 4
          %734 = dma.done %s538, %s733
          %s735 = sld [smem:[#allocation6 + $0x4]]
          %s736 = sshll.u32 %s723, 4
          %737 = dma.done %s554, %s736
          %s738 = sld [smem:[#allocation6 + $0x5]]
          %s739 = sshll.u32 %s723, 4
          %740 = dma.done %s570, %s739
          %s741 = sld [smem:[#allocation6 + $0x6]]
          %s742 = sshll.u32 %s723, 4
          %743 = dma.done %s586, %s742
          %s744 = sld [smem:[#allocation6 + $0x7]]
          %s745 = sshll.u32 %s723, 4
          %746 = dma.done %s602, %s745
          %v747 = vld [vmem:[#allocation2] sm:$0xff]
          %v748 = vld [vmem:[#allocation2 + $0x8] sm:$0xff]
          %v749 = vld [vmem:[#allocation2 + $0x10] sm:$0xff]
          %v750 = vld [vmem:[%s4] sm:$0xf]
          %v751 = vadd.f32 %v747, %v680
          %v752 = vperm.slane %v750, 0
          %v753 = vadd.f32 %v751, %v752
          %v754 = vxor.u32 %v753, 2147483648
          %v755 = vmul.f32 %v754, 1.442695
          %v756 = vpow.pop %v755
          %v757 = vadd.f32 %v756, 1.0
          %v758 = vrcp.pop %v757
          %v759 = vmul.f32 %v757, %v758
          %v760 = vsub.f32 1.0, %v759
          %v761 = vmul.f32 %v758, %v760
          %v762 = vadd.f32 %v758, %v761
          %vm763 = vweird.f32 %v757
          %vm764 = vweird.f32 %v758
          %vm765 = vmor %vm763, %vm764
          %v766 = vsel %vm765, %v758, %v762
          %v767 = vand.u32 2147483647, %v757
          %vm768 = vcmp.eq.f32.partialorder %v767, 8.507059e+37
          %v769 = vand.u32 %v757, 2147483648
          %v770 = vor.u32 1.1754944e-38, %v769
          %v771 = vsel %vm768, %v770, %v766
          %v772 = vmul.f32 1.0, %v771
          %v773 = vadd.f32 %v748, %v700
          %v774 = vperm.slane %v750, 1
          %v775 = vadd.f32 %v773, %v774
          %v776 = vxor.u32 %v775, 2147483648
          %v777 = vmul.f32 %v776, 1.442695
          %v778 = vpow.pop %v777
          %v779 = vadd.f32 %v778, 1.0
          %v780 = vrcp.pop %v779
          %v781 = vmul.f32 %v779, %v780
          %v782 = vsub.f32 1.0, %v781
          %v783 = vmul.f32 %v780, %v782
          %v784 = vadd.f32 %v780, %v783
          %vm785 = vweird.f32 %v779
          %vm786 = vweird.f32 %v780
          %vm787 = vmor %vm785, %vm786
          %v788 = vsel %vm787, %v780, %v784
          %v789 = vand.u32 2147483647, %v779
          %vm790 = vcmp.eq.f32.partialorder %v789, 8.507059e+37
          %v791 = vand.u32 %v779, 2147483648
          %v792 = vor.u32 1.1754944e-38, %v791
          %v793 = vsel %vm790, %v792, %v788
          %v794 = vmul.f32 1.0, %v793
          %v795 = vperm.slane %v750, 2
          %v796 = vadd.f32 %v749, %v795
          %v797 = vperm.slane %v750, 3
          %v798 = vadd.f32 %v720, %v797
          %v799 = vmul.f32 %v772, %v798
          %v800 = vadd.f32 %v796, %v799
          %v801 = vtanh.pop %v800
          %v802 = vsub.f32 1.0, %v794
          %v803 = vmul.f32 %v802, %v801
          %v804 = vmul.f32 %v794, %v611
          %v805 = vadd.f32 %v803, %v804
          %v806 = vld [vmem:[#allocation15] sm:$0xf]
          %v807 = vld [vmem:[#allocation12] sm:$0xff]
          %v808 = vld [vmem:[#allocation12 + $0x8] sm:$0xff]
          %v809 = vld [vmem:[#allocation12 + $0x10] sm:$0xff]
          %v810 = vld [vmem:[#allocation12 + $0x18] sm:$0xff]
          %v811 = vld [vmem:[#allocation12 + $0x20] sm:$0xff]
          %v812 = vld [vmem:[#allocation12 + $0x28] sm:$0xff]
          %v813 = vld [vmem:[#allocation12 + $0x30] sm:$0xff]
          %v814 = vld [vmem:[#allocation12 + $0x38] sm:$0xff]
          %v815 = vld [vmem:[#allocation12 + $0x40] sm:$0xff]
          %v816 = vld [vmem:[#allocation12 + $0x48] sm:$0xff]
          %v817 = vld [vmem:[#allocation12 + $0x50] sm:$0xff]
          %v818 = vld [vmem:[#allocation12 + $0x58] sm:$0xff]
          %v819 = vld [vmem:[#allocation12 + $0x60] sm:$0xff]
          %v820 = vld [vmem:[#allocation12 + $0x68] sm:$0xff]
          %v821 = vld [vmem:[#allocation12 + $0x70] sm:$0xff]
          %v822 = vld [vmem:[#allocation12 + $0x78] sm:$0xff]
          %v823 = vld [vmem:[#allocation12 + $0x80] sm:$0xff]
          %v824 = vld [vmem:[#allocation12 + $0x88] sm:$0xff]
          %v825 = vld [vmem:[#allocation12 + $0x90] sm:$0xff]
          %v826 = vld [vmem:[#allocation12 + $0x98] sm:$0xff]
          %v827 = vld [vmem:[#allocation12 + $0xa0] sm:$0xff]
          %v828 = vld [vmem:[#allocation12 + $0xa8] sm:$0xff]
          %v829 = vld [vmem:[#allocation12 + $0xb0] sm:$0xff]
          %v830 = vld [vmem:[#allocation12 + $0xb8] sm:$0xff]
          %v831 = vld [vmem:[#allocation12 + $0xc0] sm:$0xff]
          %v832 = vld [vmem:[#allocation12 + $0xc8] sm:$0xff]
          %v833 = vld [vmem:[#allocation12 + $0xd0] sm:$0xff]
          %v834 = vld [vmem:[#allocation12 + $0xd8] sm:$0xff]
          %v835 = vld [vmem:[#allocation12 + $0xe0] sm:$0xff]
          %v836 = vld [vmem:[#allocation12 + $0xe8] sm:$0xff]
          %v837 = vld [vmem:[#allocation12 + $0xf0] sm:$0xff]
          %v838 = vld [vmem:[#allocation12 + $0xf8] sm:$0xff]
          %v839 = vld [vmem:[#allocation12 + $0x100] sm:$0xff]
          %v840 = vld [vmem:[#allocation12 + $0x108] sm:$0xff]
          %v841 = vld [vmem:[#allocation12 + $0x110] sm:$0xff]
          %v842 = vld [vmem:[#allocation12 + $0x118] sm:$0xff]
          %v843 = vld [vmem:[#allocation12 + $0x120] sm:$0xff]
          %v844 = vld [vmem:[#allocation12 + $0x128] sm:$0xff]
          %v845 = vld [vmem:[#allocation12 + $0x130] sm:$0xff]
          %v846 = vld [vmem:[#allocation12 + $0x138] sm:$0xff]
          %v847 = vld [vmem:[#allocation12 + $0x140] sm:$0xff]
          %v848 = vld [vmem:[#allocation12 + $0x148] sm:$0xff]
          %v849 = vld [vmem:[#allocation12 + $0x150] sm:$0xff]
          %v850 = vld [vmem:[#allocation12 + $0x158] sm:$0xff]
          %v851 = vld [vmem:[#allocation12 + $0x160] sm:$0xff]
          %v852 = vld [vmem:[#allocation12 + $0x168] sm:$0xff]
          %v853 = vld [vmem:[#allocation12 + $0x170] sm:$0xff]
          %v854 = vld [vmem:[#allocation12 + $0x178] sm:$0xff]
          %855 = vmatpush.msra.mxu0 %v852
          %856 = vmatpush.msra.mxu0 %v849
          %857 = vmatpush.msra.mxu0 %v846
          %858 = vmatpush.msra.mxu0 %v843
          %859 = vmatpush.msra.mxu0 %v840
          %860 = vmatpush.msra.mxu0 %v837
          %861 = vmatpush.msra.mxu0 %v834
          %862 = vmatpush.msra.mxu0 %v831
          %863 = vmatpush.msra.mxu0 %v828
          %864 = vmatpush.msra.mxu0 %v825
          %865 = vmatpush.msra.mxu0 %v822
          %866 = vmatpush.msra.mxu0 %v819
          %867 = vmatpush.msra.mxu0 %v816
          %868 = vmatpush.msra.mxu0 %v813
          %869 = vmatpush.msra.mxu0 %v810
          %870 = vmatpush.msra.mxu0 %v807
          %871 = vmatmul.f32.gmra.mxu0 %v805
          %v872 = vpop.f32.mrf.mxu0
          %v873 = vadd.f32 0.0, %v872
          %874 = vdwg.mxu0
          %875 = vmatpush.msra.mxu0 %v853
          %876 = vmatpush.msra.mxu0 %v850
          %877 = vmatpush.msra.mxu0 %v847
          %878 = vmatpush.msra.mxu0 %v844
          %879 = vmatpush.msra.mxu0 %v841
          %880 = vmatpush.msra.mxu0 %v838
          %881 = vmatpush.msra.mxu0 %v835
          %882 = vmatpush.msra.mxu0 %v832
          %883 = vmatpush.msra.mxu0 %v829
          %884 = vmatpush.msra.mxu0 %v826
          %885 = vmatpush.msra.mxu0 %v823
          %886 = vmatpush.msra.mxu0 %v820
          %887 = vmatpush.msra.mxu0 %v817
          %888 = vmatpush.msra.mxu0 %v814
          %889 = vmatpush.msra.mxu0 %v811
          %890 = vmatpush.msra.mxu0 %v808
          %891 = vmatmul.f32.gmra.mxu0 %v805
          %v892 = vpop.f32.mrf.mxu0
          %v893 = vadd.f32 0.0, %v892
          %894 = vdwg.mxu0
          %895 = vmatpush.msra.mxu0 %v854
          %896 = vmatpush.msra.mxu0 %v851
          %897 = vmatpush.msra.mxu0 %v848
          %898 = vmatpush.msra.mxu0 %v845
          %899 = vmatpush.msra.mxu0 %v842
          %900 = vmatpush.msra.mxu0 %v839
          %901 = vmatpush.msra.mxu0 %v836
          %902 = vmatpush.msra.mxu0 %v833
          %903 = vmatpush.msra.mxu0 %v830
          %904 = vmatpush.msra.mxu0 %v827
          %905 = vmatpush.msra.mxu0 %v824
          %906 = vmatpush.msra.mxu0 %v821
          %907 = vmatpush.msra.mxu0 %v818
          %908 = vmatpush.msra.mxu0 %v815
          %909 = vmatpush.msra.mxu0 %v812
          %910 = vmatpush.msra.mxu0 %v809
          %911 = vmatmul.f32.gmra.mxu0 %v805
          %v912 = vpop.f32.mrf.mxu0
          %v913 = vadd.f32 0.0, %v912
          %914 = vdwg.mxu0
          %v915 = vld [vmem:[#allocation13] sm:$0xff]
          %v916 = vld [vmem:[#allocation13 + $0x8] sm:$0xff]
          %v917 = vld [vmem:[#allocation13 + $0x10] sm:$0xff]
          %v918 = vld [vmem:[#allocation13 + $0x18] sm:$0xff]
          %v919 = vld [vmem:[#allocation13 + $0x20] sm:$0xff]
          %v920 = vld [vmem:[#allocation13 + $0x28] sm:$0xff]
          %v921 = vld [vmem:[#allocation13 + $0x30] sm:$0xff]
          %v922 = vld [vmem:[#allocation13 + $0x38] sm:$0xff]
          %v923 = vld [vmem:[#allocation13 + $0x40] sm:$0xff]
          %v924 = vld [vmem:[#allocation13 + $0x48] sm:$0xff]
          %v925 = vld [vmem:[#allocation13 + $0x50] sm:$0xff]
          %v926 = vld [vmem:[#allocation13 + $0x58] sm:$0xff]
          %v927 = vld [vmem:[#allocation13 + $0x60] sm:$0xff]
          %v928 = vld [vmem:[#allocation13 + $0x68] sm:$0xff]
          %v929 = vld [vmem:[#allocation13 + $0x70] sm:$0xff]
          %v930 = vld [vmem:[#allocation13 + $0x78] sm:$0xff]
          %v931 = vld [vmem:[#allocation13 + $0x80] sm:$0xff]
          %v932 = vld [vmem:[#allocation13 + $0x88] sm:$0xff]
          %v933 = vld [vmem:[#allocation13 + $0x90] sm:$0xff]
          %v934 = vld [vmem:[#allocation13 + $0x98] sm:$0xff]
          %v935 = vld [vmem:[#allocation13 + $0xa0] sm:$0xff]
          %v936 = vld [vmem:[#allocation13 + $0xa8] sm:$0xff]
          %v937 = vld [vmem:[#allocation13 + $0xb0] sm:$0xff]
          %v938 = vld [vmem:[#allocation13 + $0xb8] sm:$0xff]
          %v939 = vld [vmem:[#allocation13 + $0xc0] sm:$0xff]
          %v940 = vld [vmem:[#allocation13 + $0xc8] sm:$0xff]
          %v941 = vld [vmem:[#allocation13 + $0xd0] sm:$0xff]
          %v942 = vld [vmem:[#allocation13 + $0xd8] sm:$0xff]
          %v943 = vld [vmem:[#allocation13 + $0xe0] sm:$0xff]
          %v944 = vld [vmem:[#allocation13 + $0xe8] sm:$0xff]
          %v945 = vld [vmem:[#allocation13 + $0xf0] sm:$0xff]
          %v946 = vld [vmem:[#allocation13 + $0xf8] sm:$0xff]
          %v947 = vld [vmem:[#allocation13 + $0x100] sm:$0xff]
          %v948 = vld [vmem:[#allocation13 + $0x108] sm:$0xff]
          %v949 = vld [vmem:[#allocation13 + $0x110] sm:$0xff]
          %v950 = vld [vmem:[#allocation13 + $0x118] sm:$0xff]
          %v951 = vld [vmem:[#allocation13 + $0x120] sm:$0xff]
          %v952 = vld [vmem:[#allocation13 + $0x128] sm:$0xff]
          %v953 = vld [vmem:[#allocation13 + $0x130] sm:$0xff]
          %v954 = vld [vmem:[#allocation13 + $0x138] sm:$0xff]
          %v955 = vld [vmem:[#allocation13 + $0x140] sm:$0xff]
          %v956 = vld [vmem:[#allocation13 + $0x148] sm:$0xff]
          %v957 = vld [vmem:[#allocation13 + $0x150] sm:$0xff]
          %v958 = vld [vmem:[#allocation13 + $0x158] sm:$0xff]
          %v959 = vld [vmem:[#allocation13 + $0x160] sm:$0xff]
          %v960 = vld [vmem:[#allocation13 + $0x168] sm:$0xff]
          %v961 = vld [vmem:[#allocation13 + $0x170] sm:$0xff]
          %v962 = vld [vmem:[#allocation13 + $0x178] sm:$0xff]
          %963 = vmatpush.msra.mxu0 %v960
          %964 = vmatpush.msra.mxu0 %v957
          %965 = vmatpush.msra.mxu0 %v954
          %966 = vmatpush.msra.mxu0 %v951
          %967 = vmatpush.msra.mxu0 %v948
          %968 = vmatpush.msra.mxu0 %v945
          %969 = vmatpush.msra.mxu0 %v942
          %970 = vmatpush.msra.mxu0 %v939
          %971 = vmatpush.msra.mxu0 %v936
          %972 = vmatpush.msra.mxu0 %v933
          %973 = vmatpush.msra.mxu0 %v930
          %974 = vmatpush.msra.mxu0 %v927
          %975 = vmatpush.msra.mxu0 %v924
          %976 = vmatpush.msra.mxu0 %v921
          %977 = vmatpush.msra.mxu0 %v918
          %978 = vmatpush.msra.mxu0 %v915
          %979 = vmatmul.f32.gmra.mxu0 %v613
          %v980 = vpop.f32.mrf.mxu0
          %v981 = vadd.f32 0.0, %v980
          %982 = vdwg.mxu0
          %983 = vmatpush.msra.mxu0 %v961
          %984 = vmatpush.msra.mxu0 %v958
          %985 = vmatpush.msra.mxu0 %v955
          %986 = vmatpush.msra.mxu0 %v952
          %987 = vmatpush.msra.mxu0 %v949
          %988 = vmatpush.msra.mxu0 %v946
          %989 = vmatpush.msra.mxu0 %v943
          %990 = vmatpush.msra.mxu0 %v940
          %991 = vmatpush.msra.mxu0 %v937
          %992 = vmatpush.msra.mxu0 %v934
          %993 = vmatpush.msra.mxu0 %v931
          %994 = vmatpush.msra.mxu0 %v928
          %995 = vmatpush.msra.mxu0 %v925
          %996 = vmatpush.msra.mxu0 %v922
          %997 = vmatpush.msra.mxu0 %v919
          %998 = vmatpush.msra.mxu0 %v916
          %999 = vmatmul.f32.gmra.mxu0 %v613
          %v1000 = vpop.f32.mrf.mxu0
          %v1001 = vadd.f32 0.0, %v1000
          %1002 = vdwg.mxu0
          %1003 = vmatpush.msra.mxu0 %v962
          %1004 = vmatpush.msra.mxu0 %v959
          %1005 = vmatpush.msra.mxu0 %v956
          %1006 = vmatpush.msra.mxu0 %v953
          %1007 = vmatpush.msra.mxu0 %v950
          %1008 = vmatpush.msra.mxu0 %v947
          %1009 = vmatpush.msra.mxu0 %v944
          %1010 = vmatpush.msra.mxu0 %v941
          %1011 = vmatpush.msra.mxu0 %v938
          %1012 = vmatpush.msra.mxu0 %v935
          %1013 = vmatpush.msra.mxu0 %v932
          %1014 = vmatpush.msra.mxu0 %v929
          %1015 = vmatpush.msra.mxu0 %v926
          %1016 = vmatpush.msra.mxu0 %v923
          %1017 = vmatpush.msra.mxu0 %v920
          %1018 = vmatpush.msra.mxu0 %v917
          %1019 = vmatmul.f32.gmra.mxu0 %v613
          %v1020 = vpop.f32.mrf.mxu0
          %v1021 = vadd.f32 0.0, %v1020
          %1022 = vdwg.mxu0
          %v1023 = vadd.f32 %v873, %v981
          %v1024 = vperm.slane %v806, 0
          %v1025 = vadd.f32 %v1023, %v1024
          %v1026 = vxor.u32 %v1025, 2147483648
          %v1027 = vmul.f32 %v1026, 1.442695
          %v1028 = vpow.pop %v1027
          %v1029 = vadd.f32 %v1028, 1.0
          %v1030 = vrcp.pop %v1029
          %v1031 = vmul.f32 %v1029, %v1030
          %v1032 = vsub.f32 1.0, %v1031
          %v1033 = vmul.f32 %v1030, %v1032
          %v1034 = vadd.f32 %v1030, %v1033
          %vm1035 = vweird.f32 %v1029
          %vm1036 = vweird.f32 %v1030
          %vm1037 = vmor %vm1035, %vm1036
          %v1038 = vsel %vm1037, %v1030, %v1034
          %v1039 = vand.u32 2147483647, %v1029
          %vm1040 = vcmp.eq.f32.partialorder %v1039, 8.507059e+37
          %v1041 = vand.u32 %v1029, 2147483648
          %v1042 = vor.u32 1.1754944e-38, %v1041
          %v1043 = vsel %vm1040, %v1042, %v1038
          %v1044 = vmul.f32 1.0, %v1043
          %v1045 = vadd.f32 %v893, %v1001
          %v1046 = vperm.slane %v806, 1
          %v1047 = vadd.f32 %v1045, %v1046
          %v1048 = vxor.u32 %v1047, 2147483648
          %v1049 = vmul.f32 %v1048, 1.442695
          %v1050 = vpow.pop %v1049
          %v1051 = vadd.f32 %v1050, 1.0
          %v1052 = vrcp.pop %v1051
          %v1053 = vmul.f32 %v1051, %v1052
          %v1054 = vsub.f32 1.0, %v1053
          %v1055 = vmul.f32 %v1052, %v1054
          %v1056 = vadd.f32 %v1052, %v1055
          %vm1057 = vweird.f32 %v1051
          %vm1058 = vweird.f32 %v1052
          %vm1059 = vmor %vm1057, %vm1058
          %v1060 = vsel %vm1059, %v1052, %v1056
          %v1061 = vand.u32 2147483647, %v1051
          %vm1062 = vcmp.eq.f32.partialorder %v1061, 8.507059e+37
          %v1063 = vand.u32 %v1051, 2147483648
          %v1064 = vor.u32 1.1754944e-38, %v1063
          %v1065 = vsel %vm1062, %v1064, %v1060
          %v1066 = vmul.f32 1.0, %v1065
          %v1067 = vperm.slane %v806, 2
          %v1068 = vadd.f32 %v913, %v1067
          %v1069 = vperm.slane %v806, 3
          %v1070 = vadd.f32 %v1021, %v1069
          %v1071 = vmul.f32 %v1044, %v1070
          %v1072 = vadd.f32 %v1068, %v1071
          %v1073 = vtanh.pop %v1072
          %v1074 = vsub.f32 1.0, %v1066
          %v1075 = vmul.f32 %v1074, %v1073
          %v1076 = vmul.f32 %v1066, %v613
          %v1077 = vadd.f32 %v1075, %v1076
          %1078 = vst [vmem:[%s11] sm:$0xff] %v805
          %s1079 = scalar_lea.vmem %s11, 8
          %1080 = vst [vmem:[%s1079] sm:$0xff] %v1077
          %1081 = vst [vmem:[#allocation3] sm:$0xff] %v1077
        $region84: #{simple_gru_forward.1} parent=51 // pred_fallthru
          _
        %v1082 = vld [vmem:[#allocation3] sm:$0xff]
        %v1083 = vld [vmem:[%s427] sm:$0xff]
        %v1084 = vld [vmem:[%s427 + $0x8] sm:$0xff]
        %v1085 = vld [vmem:[%s427 + $0x10] sm:$0xff]
        %v1086 = vld [vmem:[%s427 + $0x18] sm:$0xff]
        %v1087 = vld [vmem:[%s427 + $0x20] sm:$0xff]
        %v1088 = vld [vmem:[%s427 + $0x28] sm:$0xff]
        %v1089 = vld [vmem:[%s427 + $0x30] sm:$0xff]
        %v1090 = vld [vmem:[%s427 + $0x38] sm:$0xff]
        %v1091 = vld [vmem:[%s427 + $0x40] sm:$0xff]
        %v1092 = vld [vmem:[%s427 + $0x48] sm:$0xff]
        %v1093 = vld [vmem:[%s427 + $0x50] sm:$0xff]
        %v1094 = vld [vmem:[%s427 + $0x58] sm:$0xff]
        %v1095 = vld [vmem:[%s427 + $0x60] sm:$0xff]
        %v1096 = vld [vmem:[%s427 + $0x68] sm:$0xff]
        %v1097 = vld [vmem:[%s427 + $0x70] sm:$0xff]
        %v1098 = vld [vmem:[%s427 + $0x78] sm:$0xff]
        %v1099 = vld [vmem:[%s427 + $0x80] sm:$0xff]
        %v1100 = vld [vmem:[%s427 + $0x88] sm:$0xff]
        %v1101 = vld [vmem:[%s427 + $0x90] sm:$0xff]
        %v1102 = vld [vmem:[%s427 + $0x98] sm:$0xff]
        %v1103 = vld [vmem:[%s427 + $0xa0] sm:$0xff]
        %v1104 = vld [vmem:[%s427 + $0xa8] sm:$0xff]
        %v1105 = vld [vmem:[%s427 + $0xb0] sm:$0xff]
        %v1106 = vld [vmem:[%s427 + $0xb8] sm:$0xff]
        %v1107 = vld [vmem:[%s427 + $0xc0] sm:$0xff]
        %v1108 = vld [vmem:[%s427 + $0xc8] sm:$0xff]
        %v1109 = vld [vmem:[%s427 + $0xd0] sm:$0xff]
        %v1110 = vld [vmem:[%s427 + $0xd8] sm:$0xff]
        %v1111 = vld [vmem:[%s427 + $0xe0] sm:$0xff]
        %v1112 = vld [vmem:[%s427 + $0xe8] sm:$0xff]
        %v1113 = vld [vmem:[%s427 + $0xf0] sm:$0xff]
        %v1114 = vld [vmem:[%s427 + $0xf8] sm:$0xff]
        %v1115 = vld [vmem:[%s437] sm:$0x3]
        %v1117 = vperm.slane %v1115, 0
        %v1118 = vperm.slane %v1115, 1
        %1121 = vmatpush.msra.mxu0 %v1113
        %1122 = vmatpush.msra.mxu0 %v1111
        %1123 = vmatpush.msra.mxu0 %v1109
        %1124 = vmatpush.msra.mxu0 %v1107
        %1125 = vmatpush.msra.mxu0 %v1105
        %1126 = vmatpush.msra.mxu0 %v1103
        %1127 = vmatpush.msra.mxu0 %v1101
        %1128 = vmatpush.msra.mxu0 %v1099
        %1129 = vmatpush.msra.mxu0 %v1097
        %1130 = vmatpush.msra.mxu0 %v1095
        %1131 = vmatpush.msra.mxu0 %v1093
        %1132 = vmatpush.msra.mxu0 %v1091
        %1133 = vmatpush.msra.mxu0 %v1089
        %1134 = vmatpush.msra.mxu0 %v1087
        %1135 = vmatpush.msra.mxu0 %v1085
        %1136 = vmatpush.msra.mxu0 %v1083
        %1137 = vmatmul.f32.gmra.mxu0 %v1082
        %v1138 = vpop.f32.mrf.mxu0
        %v1139 = vadd.f32 %v1117, %v1138
        %1140 = vdwg.mxu0
        %1141 = vmatpush.msra.mxu0 %v1114
        %1142 = vmatpush.msra.mxu0 %v1112
        %1143 = vmatpush.msra.mxu0 %v1110
        %1144 = vmatpush.msra.mxu0 %v1108
        %1145 = vmatpush.msra.mxu0 %v1106
        %1146 = vmatpush.msra.mxu0 %v1104
        %1147 = vmatpush.msra.mxu0 %v1102
        %1148 = vmatpush.msra.mxu0 %v1100
        %1149 = vmatpush.msra.mxu0 %v1098
        %1150 = vmatpush.msra.mxu0 %v1096
        %1151 = vmatpush.msra.mxu0 %v1094
        %1152 = vmatpush.msra.mxu0 %v1092
        %1153 = vmatpush.msra.mxu0 %v1090
        %1154 = vmatpush.msra.mxu0 %v1088
        %1155 = vmatpush.msra.mxu0 %v1086
        %1156 = vmatpush.msra.mxu0 %v1084
        %1157 = vmatmul.f32.gmra.mxu0 %v1082
        %v1158 = vpop.f32.mrf.mxu0
        %v1159 = vadd.f32 %v1118, %v1158
        %1160 = vdwg.mxu0
        %v1161 = vtanh.pop %v1139
        %v1162 = vtanh.pop %v1159
        %1163 = vst [vmem:[%s475] sm:$0xff] %v1161
        %1164 = vst [vmem:[%s475 + $0x8] sm:$0xff] %v1162
        %s1165 = sand.u32 %s226, 1
        %s1166 = scalar_lea.sflag [#allocation9], %s1165
        %s1167 = sand.u32 %s226, 1
        %s1168 = smul.addr %s1167, 16
        %s1169 = scalar_lea.vmem [#allocation19], %s1168
        // Predicated region
        $region85: #{simple_gru_forward.1} parent=51 // pred_check
          %p1170 = pneg %p236
        $region86: #{simple_gru_forward.1} parent=51 // pred_check_branch
          %1172 = sbr.rel (%p1170) target = $region88
        $region87: #{simple_gru_forward.1} parent=51 // pred_region
          %s1173 = smul.u32 2, %s40
          %1175 = vsyncadd %s1166, 0
          %s1176 = smul.addr %s1173, 8
          %s1177 = scalar_lea.hbm %s10, %s1176
          %s1179 = sshll.u32 %s1169, 4
          %s1180 = int_to_ptr.vmem [resolvable:$true] %s1179
          %s1181 = sshll.u32 %s1177, 4
          %s1182 = int_to_ptr.hbm [resolvable:$true] %s1181
          %1184 = dma.vmem_to_hbm [thread:$0]  %s1180, 256, %s1182, %s1166
        $region88: #{simple_gru_forward.1} parent=51 // pred_fallthru
          _
        // Predicated region
        $region89: #{simple_gru_forward.1} parent=51 // pred_check
          %p1185 = pneg %p257
        $region90: #{simple_gru_forward.1} parent=51 // pred_check_branch
          %1187 = sbr.rel (%p1185) target = $region92
        $region91: #{simple_gru_forward.1} parent=51 // pred_region
          _
        $region92: #{simple_gru_forward.1} parent=51 // pred_fallthru
          _
        // Predicated region
        $region93: #{simple_gru_forward.1} parent=51 // pred_check
          %p1188 = pneg %p257
        $region94: #{simple_gru_forward.1} parent=51 // pred_check_branch
          %1190 = sbr.rel (%p1188) target = $region96
        $region95: #{simple_gru_forward.1} parent=51 // pred_region
          _
        $region96: #{simple_gru_forward.1} parent=51 // pred_fallthru
          _
      $region52: #{simple_gru_forward.1} parent=5 // pred_fallthru
        _
      %p1191 = scmp.le.s32.totalorder 2, %s35
      // Predicated region
      $region97: #{simple_gru_forward.1} parent=5 // pred_check
        %p1192 = pneg %p1191
      $region98: #{simple_gru_forward.1} parent=5 // pred_check_branch
        %1194 = sbr.rel (%p1192) target = $region100
      $region99: #{simple_gru_forward.1} parent=5 // pred_region
        %s1195 = ssub.s32 %s35, 2
        // Predicated region
        $region101: #{simple_gru_forward.1} parent=99 // pred_check
          %p1196 = pneg %p242
        $region102: #{simple_gru_forward.1} parent=99 // pred_check_branch
          %1198 = sbr.rel (%p1196) target = $region104
        $region103: #{simple_gru_forward.1} parent=99 // pred_region
          %s1199 = sand.u32 %s227, 1
          %s1200 = scalar_lea.sflag [#allocation9], %s1199
          %s1201 = sand.u32 %s227, 1
          %s1202 = smul.addr %s1201, 16
          %s1203 = scalar_lea.vmem [#allocation19], %s1202
          %1205 = dma.done %s1200, 256
        $region104: #{simple_gru_forward.1} parent=99 // pred_fallthru
          _
      $region100: #{simple_gru_forward.1} parent=5 // pred_fallthru
        _
    $region6: #{simple_gru_forward.1} parent=1 // loop_footer
      %s39 = sadd.s32 1, %s35
    $region7: #{simple_gru_forward.1} parent=1 // loop_footer_branch
      %34 = sbr.rel target = $region3
    $region8: #{simple_gru_forward.1} parent=1 // loop_exit
      _
    %1206 = vsyncpa [#allocation8], 1
    %s1207 = scalar_lea.sflag [#allocation8], 1
    %1208 = vsyncpa %s1207, 1
    %1209 = vsyncpa [#allocation11], 1
    %1210 = vsyncpa [#allocation14], 1
    %1211 = vsyncpa [#allocation17], 1
    %s1212 = scalar_lea.sflag [#allocation17], 1
    %1213 = vsyncpa %s1212, 1
    %1214 = vsyncpa [#allocation9], 1
    %s1215 = scalar_lea.sflag [#allocation9], 1
    %1216 = vsyncpa %s1215, 1
  %1217 = vsyncmov [#allocation4]
  %s1218 = vpop.sfrf %1217
  %p1219 = scmp.eq.s32.totalorder %s1218, 0
  %p1220 = pneg %p1219
  %1222 = shalt.err (%p1220)
  %s1223 = scalar_lea.sflag [#allocation4], 1
  %1224 = vsyncmov %s1223
  %s1225 = vpop.sfrf %1224
  %p1226 = scmp.eq.s32.totalorder %s1225, 0
  %p1227 = pneg %p1226
  %1229 = shalt.err (%p1227)
  %s1230 = scalar_lea.sflag [#allocation4], 2
  %1231 = vsyncmov %s1230
  %s1232 = vpop.sfrf %1231
  %p1233 = scmp.eq.s32.totalorder %s1232, 0
  %p1234 = pneg %p1233
  %1236 = shalt.err (%p1234)
  %s1237 = scalar_lea.sflag [#allocation4], 3
  %1238 = vsyncmov %s1237
  %s1239 = vpop.sfrf %1238
  %p1240 = scmp.eq.s32.totalorder %s1239, 0
  %p1241 = pneg %p1240
  %1243 = shalt.err (%p1241)
  %s1244 = scalar_lea.sflag [#allocation4], 4
  %1245 = vsyncmov %s1244
  %s1246 = vpop.sfrf %1245
  %p1247 = scmp.eq.s32.totalorder %s1246, 0
  %p1248 = pneg %p1247
  %1250 = shalt.err (%p1248)
  %s1251 = scalar_lea.sflag [#allocation4], 5
  %1252 = vsyncmov %s1251
  %s1253 = vpop.sfrf %1252
  %p1254 = scmp.eq.s32.totalorder %s1253, 0
  %p1255 = pneg %p1254
  %1257 = shalt.err (%p1255)
  %s1258 = scalar_lea.sflag [#allocation4], 6
  %1259 = vsyncmov %s1258
  %s1260 = vpop.sfrf %1259
  %p1261 = scmp.eq.s32.totalorder %s1260, 0
  %p1262 = pneg %p1261
  %1264 = shalt.err (%p1262)
  %s1265 = scalar_lea.sflag [#allocation4], 7
  %1266 = vsyncmov %s1265
  %s1267 = vpop.sfrf %1266
  %p1268 = scmp.eq.s32.totalorder %s1267, 0
  %p1269 = pneg %p1268
  %1271 = shalt.err (%p1269)

</llo_original>
